<compile_context>
chip_gen: v7x
topology: tpu7x:2x2x1
jax: 0.10.0
libtpu: 0.0.40
codegen_flags: <defaults>
</compile_context>

<pallas_src>
import jax
import jax.numpy as jnp
from jax.experimental import pallas as pl
from jax.experimental.pallas import tpu as pltpu

INPUT_DIM = 11
HIDDEN_DIM = 256
OUTPUT_DIM = 4
NUM_HIDDEN_LAYERS = 5      # -> 6 Linear layers total (matches the PyTorch module)
OUT_PAD = 128              # last-layer weight padded to 128 lanes for the MXU
TM_MAX = 1024              # max batch-tile rows per grid step


def _supports_bf16_elementwise():
    # v6e/v7x have bf16 VPU/EUP paths; v5e (and older) do not.
    try:
        kind = jax.devices()[0].device_kind.lower()
    except Exception:
        return False
    return ("v6" in kind) or ("v7" in kind)


_BF16_ACT = _supports_bf16_elementwise()
_ACT_DTYPE = jnp.bfloat16 if _BF16_ACT else jnp.float32


def _silu(z):
    # SiLU(z) = z * sigmoid(z); sigmoid via one tanh -> a single EUP op/element.
    return z * (0.5 * jnp.tanh(0.5 * z) + 0.5)


def mlp_kernel(x_ref, w0_ref, b0_ref, wh_ref, bh_ref, wo_ref, bo_ref, o_ref):
    # Layer 0: Linear(INPUT_DIM -> HIDDEN_DIM) + SiLU.  x arrives as bf16.
    z = jnp.dot(x_ref[...], w0_ref[...],
                preferred_element_type=jnp.float32) + b0_ref[...]
    h = _silu(z.astype(_ACT_DTYPE)).astype(jnp.bfloat16)

    # 4 stacked hidden layers: Linear(HIDDEN -> HIDDEN) + SiLU (unrolled).
    for i in range(NUM_HIDDEN_LAYERS - 1):
        z = jnp.dot(h, wh_ref[i], preferred_element_type=jnp.float32) + bh_ref[i]
        h = _silu(z.astype(_ACT_DTYPE)).astype(jnp.bfloat16)

    # Output layer: MXU runs at 128 lanes, only the first OUTPUT_DIM are stored.
    out = jnp.dot(h, wo_ref[...], preferred_element_type=jnp.float32) + bo_ref[...]
    o_ref[...] = out[:, :OUTPUT_DIM].astype(o_ref.dtype)


def prepare_params(params):
    """One-time weight prep (outside the per-call jit): bf16 matmul weights,
    f32 biases, hidden layers stacked, last layer zero-padded to OUT_PAD lanes."""
    w0 = params[0][0].astype(jnp.bfloat16)
    b0 = params[0][1].astype(jnp.float32)
    wh = jnp.stack([params[i][0] for i in range(1, NUM_HIDDEN_LAYERS)]).astype(jnp.bfloat16)
    bh = jnp.stack([params[i][1] for i in range(1, NUM_HIDDEN_LAYERS)]).astype(jnp.float32)
    w_last, b_last = params[NUM_HIDDEN_LAYERS]
    wo = jnp.pad(w_last, ((0, 0), (0, OUT_PAD - OUTPUT_DIM))).astype(jnp.bfloat16)
    bo = jnp.pad(b_last, ((0, 0), (0, OUT_PAD - OUTPUT_DIM))).astype(jnp.float32)
    return (w0, b0, wh, bh, wo, bo)


def _round_up(n, m):
    return -(-n // m) * m


def _tiling(batch):
    """Pick (tile_rows, num_tiles): as big as possible (fewer grid steps), but
    >= 2 steps for large batches so v7x's two TensorCores both get work."""
    rows = _round_up(max(batch, 1), 8)
    if rows <= TM_MAX:
        return rows, 1
    nb = pl.cdiv(rows, TM_MAX)
    tm = _round_up(pl.cdiv(rows, nb), 8)
    return tm, nb


@jax.jit
def mlp_forward(x, prepped):
    """x: (batch, INPUT_DIM) float. prepped: output of prepare_params()."""
    w0, b0, wh, bh, wo, bo = prepped
    batch = x.shape[0]
    tm, nb = _tiling(batch)
    padded = tm * nb

    xb = x.astype(jnp.bfloat16)
    if padded != batch:
        xb = jnp.pad(xb, ((0, padded - batch), (0, 0)))

    weight_bytes = (w0.size + wh.size + wo.size) * 2 + (b0.size + bh.size + bo.size) * 4
    cost = pl.CostEstimate(
        flops=2 * padded * (INPUT_DIM * HIDDEN_DIM
                            + (NUM_HIDDEN_LAYERS - 1) * HIDDEN_DIM * HIDDEN_DIM
                            + HIDDEN_DIM * OUT_PAD),
        transcendentals=padded * HIDDEN_DIM * NUM_HIDDEN_LAYERS,
        bytes_accessed=padded * (INPUT_DIM * 2 + OUTPUT_DIM * 4) + weight_bytes,
    )

    out = pl.pallas_call(
        mlp_kernel,
        out_shape=jax.ShapeDtypeStruct((padded, OUTPUT_DIM), jnp.float32),
        grid=(nb,),
        in_specs=[
            pl.BlockSpec((tm, INPUT_DIM), lambda i: (i, 0)),   # x: tiled over batch
            pl.BlockSpec(w0.shape, lambda i: (0, 0)),          # weights: VMEM-resident
            pl.BlockSpec(b0.shape, lambda i: (0, 0)),
            pl.BlockSpec(wh.shape, lambda i: (0, 0, 0)),
            pl.BlockSpec(bh.shape, lambda i: (0, 0, 0)),
            pl.BlockSpec(wo.shape, lambda i: (0, 0)),
            pl.BlockSpec(bo.shape, lambda i: (0, 0)),
        ],
        out_specs=pl.BlockSpec((tm, OUTPUT_DIM), lambda i: (i, 0)),
        compiler_params=pltpu.CompilerParams(
            dimension_semantics=("parallel",),
            vmem_limit_bytes=24 << 20,   # fits v5e/v6e/v7x comfortably at TM_MAX
        ),
        cost_estimate=cost,
    )(xb, w0, b0, wh, bh, wo, bo)

    if padded != batch:
        out = out[:batch]
    return out


def init_params(key):
    """Deterministic init mirroring torch.nn.Linear (uniform +-1/sqrt(fan_in))."""
    dims = [INPUT_DIM] + [HIDDEN_DIM] * NUM_HIDDEN_LAYERS + [OUTPUT_DIM]
    params = []
    for i in range(len(dims) - 1):
        fan_in, fan_out = dims[i], dims[i + 1]
        key, kw, kb = jax.random.split(key, 3)
        bound = 1.0 / (fan_in ** 0.5)
        w = jax.random.uniform(kw, (fan_in, fan_out), jnp.float32, -bound, bound)
        b = jax.random.uniform(kb, (1, fan_out), jnp.float32, -bound, bound)
        params.append((w, b))
    return params


def reference_forward(x, params):
    """Pure-JAX reference mimicking the kernel numerics (bf16 dot operands,
    f32 accumulation, exact sigmoid, activations in _ACT_DTYPE between layers)."""
    h = x.astype(jnp.bfloat16)
    n = len(params)
    for i, (w, b) in enumerate(params):
        z = jnp.dot(h, w.astype(jnp.bfloat16), preferred_element_type=jnp.float32) + b
        if i < n - 1:
            za = z.astype(_ACT_DTYPE)
            h = (za * jax.nn.sigmoid(za)).astype(jnp.bfloat16)
        else:
            h = z
    return h


def reference_forward_f32(x, params):
    """Pure-f32 reference matching the original PyTorch module semantics."""
    h = x
    n = len(params)
    for i, (w, b) in enumerate(params):
        z = h @ w + b
        h = z * jax.nn.sigmoid(z) if i < n - 1 else z
    return h


if __name__ == "__main__":
    key = jax.random.PRNGKey(0)
    kx, kp = jax.random.split(key)
    params = init_params(kp)
    prepped = prepare_params(params)

    # Exercise: single-tile path, non-8-aligned padding path, multi-tile grid path.
    for batch in (64, 200, 2304):
        xb = jax.random.normal(jax.random.fold_in(kx, batch),
                               (batch, INPUT_DIM), jnp.float32)
        out = jax.block_until_ready(mlp_forward(xb, prepped))
        assert out.shape == (batch, OUTPUT_DIM)

        ref = reference_forward(xb, params)
        assert jnp.allclose(out, ref, atol=2e-2, rtol=2e-2), f"mismatch at batch={batch}"

        ref32 = reference_forward_f32(xb, params)
        assert jnp.allclose(out, ref32, atol=5e-2, rtol=5e-2), f"f32 mismatch at batch={batch}"

    print("KERNEL_OK")
</pallas_src>

<mosaic_0001>
module attributes {stable_mosaic.version = 11 : i64} {
  func.func @mlp_kernel(%arg0: i32, %arg1: memref<64x11xbf16, #tpu.memory_space<vmem>>, %arg2: memref<11x256xbf16, #tpu.memory_space<vmem>>, %arg3: memref<1x256xf32, #tpu.memory_space<vmem>>, %arg4: memref<4x256x256xbf16, #tpu.memory_space<vmem>>, %arg5: memref<4x1x256xf32, #tpu.memory_space<vmem>>, %arg6: memref<256x128xbf16, #tpu.memory_space<vmem>>, %arg7: memref<1x128xf32, #tpu.memory_space<vmem>>, %arg8: memref<64x4xf32, #tpu.memory_space<vmem>>) attributes {dimension_semantics = [#tpu.dimension_semantics<parallel>], iteration_bounds = array<i64: 1>, scalar_prefetch = 0 : i64, scratch_operands = 0 : i64, tpu.core_type = #tpu.core_type<tc>, window_params = [{transform_indices = @transform_0, window_bounds = array<i64: 64, 11>}, {pipeline_mode = #tpu.pipeline_mode<synchronous>, transform_indices = @transform_1, window_bounds = array<i64: 11, 256>}, {pipeline_mode = #tpu.pipeline_mode<synchronous>, transform_indices = @transform_2, window_bounds = array<i64: 1, 256>}, {pipeline_mode = #tpu.pipeline_mode<synchronous>, transform_indices = @transform_3, window_bounds = array<i64: 4, 256, 256>}, {pipeline_mode = #tpu.pipeline_mode<synchronous>, transform_indices = @transform_4, window_bounds = array<i64: 4, 1, 256>}, {pipeline_mode = #tpu.pipeline_mode<synchronous>, transform_indices = @transform_5, window_bounds = array<i64: 256, 128>}, {pipeline_mode = #tpu.pipeline_mode<synchronous>, transform_indices = @transform_6, window_bounds = array<i64: 1, 128>}, {transform_indices = @transform_7, window_bounds = array<i64: 64, 4>}]} {
    %c0 = arith.constant 0 : index
    %c0_0 = arith.constant 0 : index
    %0 = vector.load %arg1[%c0, %c0_0] : memref<64x11xbf16, #tpu.memory_space<vmem>>, vector<64x11xbf16>
    %c0_1 = arith.constant 0 : index
    %c0_2 = arith.constant 0 : index
    %1 = vector.load %arg2[%c0_1, %c0_2] : memref<11x256xbf16, #tpu.memory_space<vmem>>, vector<11x256xbf16>
    %cst = arith.constant dense<0.000000e+00> : vector<64x256xf32>
    %2 = tpu.matmul %0, %1, %cst {dimension_numbers = #tpu.dot_dimension_numbers<[1], [0], [0], [1], [0, 0, 1, 1], [], []>} : vector<64x11xbf16>, vector<11x256xbf16>, vector<64x256xf32> -> vector<64x256xf32>
    %c0_3 = arith.constant 0 : index
    %c0_4 = arith.constant 0 : index
    %3 = vector.load %arg3[%c0_3, %c0_4] : memref<1x256xf32, #tpu.memory_space<vmem>>, vector<1x256xf32>
    %4 = vector.broadcast %3 : vector<1x256xf32> to vector<64x256xf32>
    %5 = arith.addf %2, %4 : vector<64x256xf32>
    %cst_5 = arith.constant 5.000000e-01 : f32
    %6 = vector.broadcast %cst_5 : f32 to vector<64x256xf32>
    %7 = arith.mulf %6, %5 : vector<64x256xf32>
    %8 = math.tanh %7 : vector<64x256xf32>
    %cst_6 = arith.constant 5.000000e-01 : f32
    %9 = vector.broadcast %cst_6 : f32 to vector<64x256xf32>
    %10 = arith.mulf %9, %8 : vector<64x256xf32>
    %cst_7 = arith.constant 5.000000e-01 : f32
    %11 = vector.broadcast %cst_7 : f32 to vector<64x256xf32>
    %12 = arith.addf %10, %11 : vector<64x256xf32>
    %13 = arith.mulf %5, %12 : vector<64x256xf32>
    %14 = arith.truncf %13 : vector<64x256xf32> to vector<64x256xbf16>
    %c0_8 = arith.constant 0 : index
    %c0_9 = arith.constant 0 : index
    %c0_10 = arith.constant 0 : index
    %15 = vector.load %arg4[%c0_8, %c0_9, %c0_10] : memref<4x256x256xbf16, #tpu.memory_space<vmem>>, vector<1x256x256xbf16>
    %16 = vector.shape_cast %15 : vector<1x256x256xbf16> to vector<256x256xbf16>
    %cst_11 = arith.constant dense<0.000000e+00> : vector<64x256xf32>
    %17 = tpu.matmul %14, %16, %cst_11 {dimension_numbers = #tpu.dot_dimension_numbers<[1], [0], [0], [1], [0, 0, 1, 1], [], []>} : vector<64x256xbf16>, vector<256x256xbf16>, vector<64x256xf32> -> vector<64x256xf32>
    %c0_12 = arith.constant 0 : index
    %c0_13 = arith.constant 0 : index
    %c0_14 = arith.constant 0 : index
    %18 = vector.load %arg5[%c0_12, %c0_13, %c0_14] : memref<4x1x256xf32, #tpu.memory_space<vmem>>, vector<1x1x256xf32>
    %19 = vector.shape_cast %18 : vector<1x1x256xf32> to vector<1x256xf32>
    %20 = vector.broadcast %19 : vector<1x256xf32> to vector<64x256xf32>
    %21 = arith.addf %17, %20 : vector<64x256xf32>
    %cst_15 = arith.constant 5.000000e-01 : f32
    %22 = vector.broadcast %cst_15 : f32 to vector<64x256xf32>
    %23 = arith.mulf %22, %21 : vector<64x256xf32>
    %24 = math.tanh %23 : vector<64x256xf32>
    %cst_16 = arith.constant 5.000000e-01 : f32
    %25 = vector.broadcast %cst_16 : f32 to vector<64x256xf32>
    %26 = arith.mulf %25, %24 : vector<64x256xf32>
    %cst_17 = arith.constant 5.000000e-01 : f32
    %27 = vector.broadcast %cst_17 : f32 to vector<64x256xf32>
    %28 = arith.addf %26, %27 : vector<64x256xf32>
    %29 = arith.mulf %21, %28 : vector<64x256xf32>
    %30 = arith.truncf %29 : vector<64x256xf32> to vector<64x256xbf16>
    %c1 = arith.constant 1 : index
    %c0_18 = arith.constant 0 : index
    %c0_19 = arith.constant 0 : index
    %31 = vector.load %arg4[%c1, %c0_18, %c0_19] : memref<4x256x256xbf16, #tpu.memory_space<vmem>>, vector<1x256x256xbf16>
    %32 = vector.shape_cast %31 : vector<1x256x256xbf16> to vector<256x256xbf16>
    %cst_20 = arith.constant dense<0.000000e+00> : vector<64x256xf32>
    %33 = tpu.matmul %30, %32, %cst_20 {dimension_numbers = #tpu.dot_dimension_numbers<[1], [0], [0], [1], [0, 0, 1, 1], [], []>} : vector<64x256xbf16>, vector<256x256xbf16>, vector<64x256xf32> -> vector<64x256xf32>
    %c1_21 = arith.constant 1 : index
    %c0_22 = arith.constant 0 : index
    %c0_23 = arith.constant 0 : index
    %34 = vector.load %arg5[%c1_21, %c0_22, %c0_23] : memref<4x1x256xf32, #tpu.memory_space<vmem>>, vector<1x1x256xf32>
    %35 = vector.shape_cast %34 : vector<1x1x256xf32> to vector<1x256xf32>
    %36 = vector.broadcast %35 : vector<1x256xf32> to vector<64x256xf32>
    %37 = arith.addf %33, %36 : vector<64x256xf32>
    %cst_24 = arith.constant 5.000000e-01 : f32
    %38 = vector.broadcast %cst_24 : f32 to vector<64x256xf32>
    %39 = arith.mulf %38, %37 : vector<64x256xf32>
    %40 = math.tanh %39 : vector<64x256xf32>
    %cst_25 = arith.constant 5.000000e-01 : f32
    %41 = vector.broadcast %cst_25 : f32 to vector<64x256xf32>
    %42 = arith.mulf %41, %40 : vector<64x256xf32>
    %cst_26 = arith.constant 5.000000e-01 : f32
    %43 = vector.broadcast %cst_26 : f32 to vector<64x256xf32>
    %44 = arith.addf %42, %43 : vector<64x256xf32>
    %45 = arith.mulf %37, %44 : vector<64x256xf32>
    %46 = arith.truncf %45 : vector<64x256xf32> to vector<64x256xbf16>
    %c2 = arith.constant 2 : index
    %c0_27 = arith.constant 0 : index
    %c0_28 = arith.constant 0 : index
    %47 = vector.load %arg4[%c2, %c0_27, %c0_28] : memref<4x256x256xbf16, #tpu.memory_space<vmem>>, vector<1x256x256xbf16>
    %48 = vector.shape_cast %47 : vector<1x256x256xbf16> to vector<256x256xbf16>
    %cst_29 = arith.constant dense<0.000000e+00> : vector<64x256xf32>
    %49 = tpu.matmul %46, %48, %cst_29 {dimension_numbers = #tpu.dot_dimension_numbers<[1], [0], [0], [1], [0, 0, 1, 1], [], []>} : vector<64x256xbf16>, vector<256x256xbf16>, vector<64x256xf32> -> vector<64x256xf32>
    %c2_30 = arith.constant 2 : index
    %c0_31 = arith.constant 0 : index
    %c0_32 = arith.constant 0 : index
    %50 = vector.load %arg5[%c2_30, %c0_31, %c0_32] : memref<4x1x256xf32, #tpu.memory_space<vmem>>, vector<1x1x256xf32>
    %51 = vector.shape_cast %50 : vector<1x1x256xf32> to vector<1x256xf32>
    %52 = vector.broadcast %51 : vector<1x256xf32> to vector<64x256xf32>
    %53 = arith.addf %49, %52 : vector<64x256xf32>
    %cst_33 = arith.constant 5.000000e-01 : f32
    %54 = vector.broadcast %cst_33 : f32 to vector<64x256xf32>
    %55 = arith.mulf %54, %53 : vector<64x256xf32>
    %56 = math.tanh %55 : vector<64x256xf32>
    %cst_34 = arith.constant 5.000000e-01 : f32
    %57 = vector.broadcast %cst_34 : f32 to vector<64x256xf32>
    %58 = arith.mulf %57, %56 : vector<64x256xf32>
    %cst_35 = arith.constant 5.000000e-01 : f32
    %59 = vector.broadcast %cst_35 : f32 to vector<64x256xf32>
    %60 = arith.addf %58, %59 : vector<64x256xf32>
    %61 = arith.mulf %53, %60 : vector<64x256xf32>
    %62 = arith.truncf %61 : vector<64x256xf32> to vector<64x256xbf16>
    %c3 = arith.constant 3 : index
    %c0_36 = arith.constant 0 : index
    %c0_37 = arith.constant 0 : index
    %63 = vector.load %arg4[%c3, %c0_36, %c0_37] : memref<4x256x256xbf16, #tpu.memory_space<vmem>>, vector<1x256x256xbf16>
    %64 = vector.shape_cast %63 : vector<1x256x256xbf16> to vector<256x256xbf16>
    %cst_38 = arith.constant dense<0.000000e+00> : vector<64x256xf32>
    %65 = tpu.matmul %62, %64, %cst_38 {dimension_numbers = #tpu.dot_dimension_numbers<[1], [0], [0], [1], [0, 0, 1, 1], [], []>} : vector<64x256xbf16>, vector<256x256xbf16>, vector<64x256xf32> -> vector<64x256xf32>
    %c3_39 = arith.constant 3 : index
    %c0_40 = arith.constant 0 : index
    %c0_41 = arith.constant 0 : index
    %66 = vector.load %arg5[%c3_39, %c0_40, %c0_41] : memref<4x1x256xf32, #tpu.memory_space<vmem>>, vector<1x1x256xf32>
    %67 = vector.shape_cast %66 : vector<1x1x256xf32> to vector<1x256xf32>
    %68 = vector.broadcast %67 : vector<1x256xf32> to vector<64x256xf32>
    %69 = arith.addf %65, %68 : vector<64x256xf32>
    %cst_42 = arith.constant 5.000000e-01 : f32
    %70 = vector.broadcast %cst_42 : f32 to vector<64x256xf32>
    %71 = arith.mulf %70, %69 : vector<64x256xf32>
    %72 = math.tanh %71 : vector<64x256xf32>
    %cst_43 = arith.constant 5.000000e-01 : f32
    %73 = vector.broadcast %cst_43 : f32 to vector<64x256xf32>
    %74 = arith.mulf %73, %72 : vector<64x256xf32>
    %cst_44 = arith.constant 5.000000e-01 : f32
    %75 = vector.broadcast %cst_44 : f32 to vector<64x256xf32>
    %76 = arith.addf %74, %75 : vector<64x256xf32>
    %77 = arith.mulf %69, %76 : vector<64x256xf32>
    %78 = arith.truncf %77 : vector<64x256xf32> to vector<64x256xbf16>
    %c0_45 = arith.constant 0 : index
    %c0_46 = arith.constant 0 : index
    %79 = vector.load %arg6[%c0_45, %c0_46] : memref<256x128xbf16, #tpu.memory_space<vmem>>, vector<256x128xbf16>
    %cst_47 = arith.constant dense<0.000000e+00> : vector<64x128xf32>
    %80 = tpu.matmul %78, %79, %cst_47 {dimension_numbers = #tpu.dot_dimension_numbers<[1], [0], [0], [1], [0, 0, 1, 1], [], []>} : vector<64x256xbf16>, vector<256x128xbf16>, vector<64x128xf32> -> vector<64x128xf32>
    %c0_48 = arith.constant 0 : index
    %c0_49 = arith.constant 0 : index
    %81 = vector.load %arg7[%c0_48, %c0_49] : memref<1x128xf32, #tpu.memory_space<vmem>>, vector<1x128xf32>
    %82 = vector.broadcast %81 : vector<1x128xf32> to vector<64x128xf32>
    %83 = arith.addf %80, %82 : vector<64x128xf32>
    %84 = vector.extract_strided_slice %83 {offsets = [0, 0], sizes = [64, 4], strides = [1, 1]} : vector<64x128xf32> to vector<64x4xf32>
    %c0_50 = arith.constant 0 : index
    %c0_51 = arith.constant 0 : index
    %85 = vector.load %arg8[%c0_50, %c0_51] : memref<64x4xf32, #tpu.memory_space<vmem>>, vector<64x4xf32>
    tpu.vector_store %arg8[%c0_50, %c0_51], %84 {strides = array<i32>} : memref<64x4xf32, #tpu.memory_space<vmem>>, vector<64x4xf32>,
    return
  }
  func.func @transform_0(%arg0: i32) -> (i32, i32) {
    %c0_i32 = arith.constant 0 : i32
    %c0_i32_0 = arith.constant 0 : i32
    return %arg0, %c0_i32 : i32, i32
  }
  func.func @transform_1(%arg0: i32) -> (i32, i32) {
    %c0_i32 = arith.constant 0 : i32
    %c0_i32_0 = arith.constant 0 : i32
    %c0_i32_1 = arith.constant 0 : i32
    return %c0_i32, %c0_i32_0 : i32, i32
  }
  func.func @transform_2(%arg0: i32) -> (i32, i32) {
    %c0_i32 = arith.constant 0 : i32
    %c0_i32_0 = arith.constant 0 : i32
    %c0_i32_1 = arith.constant 0 : i32
    return %c0_i32, %c0_i32_0 : i32, i32
  }
  func.func @transform_3(%arg0: i32) -> (i32, i32, i32) {
    %c0_i32 = arith.constant 0 : i32
    %c0_i32_0 = arith.constant 0 : i32
    %c0_i32_1 = arith.constant 0 : i32
    %c0_i32_2 = arith.constant 0 : i32
    return %c0_i32, %c0_i32_0, %c0_i32_1 : i32, i32, i32
  }
  func.func @transform_4(%arg0: i32) -> (i32, i32, i32) {
    %c0_i32 = arith.constant 0 : i32
    %c0_i32_0 = arith.constant 0 : i32
    %c0_i32_1 = arith.constant 0 : i32
    %c0_i32_2 = arith.constant 0 : i32
    return %c0_i32, %c0_i32_0, %c0_i32_1 : i32, i32, i32
  }
  func.func @transform_5(%arg0: i32) -> (i32, i32) {
    %c0_i32 = arith.constant 0 : i32
    %c0_i32_0 = arith.constant 0 : i32
    %c0_i32_1 = arith.constant 0 : i32
    return %c0_i32, %c0_i32_0 : i32, i32
  }
  func.func @transform_6(%arg0: i32) -> (i32, i32) {
    %c0_i32 = arith.constant 0 : i32
    %c0_i32_0 = arith.constant 0 : i32
    %c0_i32_1 = arith.constant 0 : i32
    return %c0_i32, %c0_i32_0 : i32, i32
  }
  func.func @transform_7(%arg0: i32) -> (i32, i32) {
    %c0_i32 = arith.constant 0 : i32
    %c0_i32_0 = arith.constant 0 : i32
    return %arg0, %c0_i32 : i32, i32
  }
}

</mosaic_0001>

<llo_original>
// kernel: mlp_forward.1
$region0: #{mlp_forward.1}
  #allocation0 [shape = 'u32[]', space=smem, size = 0x4, offset = 0x4, fixed_abs, tag = 'smem constant byte address 0x4 - core index']
  #allocation1 [shape = 'u32[144,128]{1,0:T(1,128)}', space=vmem, size = 0x12000, scoped, tag = 'internal scratch']
  %s0 = inlined_call_operand.vmem [shape: bf16[64,11], index: 0, kind: input, shape index: {}]
  %s1 = inlined_call_operand.vmem [shape: bf16[11,256], index: 1, kind: input, shape index: {}]
  %s2 = inlined_call_operand.vmem [shape: f32[1,256], index: 2, kind: input, shape index: {}]
  %s3 = inlined_call_operand.hbm [shape: bf16[4,256,256], index: 3, kind: input, shape index: {}]
  %s4 = inlined_call_operand.vmem [shape: f32[4,1,256], index: 4, kind: input, shape index: {}]
  %s5 = inlined_call_operand.hbm [shape: bf16[256,128], index: 5, kind: input, shape index: {}]
  %s6 = inlined_call_operand.vmem [shape: f32[1,128], index: 6, kind: input, shape index: {}]
  %s7 = inlined_call_operand.vmem [shape: f32[64,4], index: 7, kind: output, shape index: {}]
  %s8 = sld [smem:[#allocation0]]
  $region46: #{mlp_forward.1} parent=0
    _
  %s10 = ssub.s32 1, %s8
  %s11 = scalar_select 0, %s10, %s8
  $region1: #{mlp_forward.1} parent=0
    #allocation2 [shape = 'u8[524288]{0}', space=vmem, size = 0x80000, scoped, tag = 'input window, operand 3, single buffered']
    #allocation3 [shape = 's32[1]{0}', space=sflag, size = 0x4, scoped, tag = 'scoped memory for mlp_forward.1']
    #allocation4 [shape = 'u8[65536]{0}', space=vmem, size = 0x10000, scoped, tag = 'input window, operand 5, single buffered']
    #allocation5 [shape = 's32[1]{0}', space=sflag, size = 0x4, scoped, tag = 'scoped memory for mlp_forward.1']
    %12 = vsyncpa [#allocation3], 0
    %13 = vsyncpa [#allocation5], 0
    // Predicated region
    $region2: #{mlp_forward.1} parent=1 // pred_check
      _
    $region3: #{mlp_forward.1} parent=1 // pred_check_branch
      %15 = sbr.rel (0) target = $region5
    $region4: #{mlp_forward.1} parent=1 // pred_region
      _
    $region5: #{mlp_forward.1} parent=1 // pred_fallthru
      _
    // Predicated region
    $region6: #{mlp_forward.1} parent=1 // pred_check
      _
    $region7: #{mlp_forward.1} parent=1 // pred_check_branch
      %17 = sbr.rel (0) target = $region9
    $region8: #{mlp_forward.1} parent=1 // pred_region
      _
    $region9: #{mlp_forward.1} parent=1 // pred_fallthru
      _
    // Predicated region
    $region10: #{mlp_forward.1} parent=1 // pred_check
      _
    $region11: #{mlp_forward.1} parent=1 // pred_check_branch
      %19 = sbr.rel (0) target = $region13
    $region12: #{mlp_forward.1} parent=1 // pred_region
      _
    $region13: #{mlp_forward.1} parent=1 // pred_fallthru
      _
    // Predicated region
    $region14: #{mlp_forward.1} parent=1 // pred_check
      _
    $region15: #{mlp_forward.1} parent=1 // pred_check_branch
      %21 = sbr.rel (0) target = $region17
    $region16: #{mlp_forward.1} parent=1 // pred_region
      %s23 = ssub.s32 16384, 16384
      %24 = vsyncadd [#allocation3], %s23
      %s25 = sshll.u32 [#allocation2], 4
      %s26 = int_to_ptr.vmem [resolvable:$true] %s25
      %31 = dma.hbm_to_vmem [thread:$0]  %s3, 16384, %s26, [#allocation3], 128, 128, 8
    $region17: #{mlp_forward.1} parent=1 // pred_fallthru
      _
    // Predicated region
    $region18: #{mlp_forward.1} parent=1 // pred_check
      _
    $region19: #{mlp_forward.1} parent=1 // pred_check_branch
      %33 = sbr.rel (0) target = $region21
    $region20: #{mlp_forward.1} parent=1 // pred_region
      _
    $region21: #{mlp_forward.1} parent=1 // pred_fallthru
      _
    // Predicated region
    $region22: #{mlp_forward.1} parent=1 // pred_check
      _
    $region23: #{mlp_forward.1} parent=1 // pred_check_branch
      %35 = sbr.rel (0) target = $region25
    $region24: #{mlp_forward.1} parent=1 // pred_region
      %s37 = ssub.s32 2048, 2048
      %38 = vsyncadd [#allocation5], %s37
      %s39 = sshll.u32 [#allocation4], 4
      %s40 = int_to_ptr.vmem [resolvable:$true] %s39
      %45 = dma.hbm_to_vmem [thread:$0]  %s5, 2048, %s40, [#allocation5], 64, 64, 4
    $region25: #{mlp_forward.1} parent=1 // pred_fallthru
      _
    // Predicated region
    $region26: #{mlp_forward.1} parent=1 // pred_check
      _
    $region27: #{mlp_forward.1} parent=1 // pred_check_branch
      %47 = sbr.rel (0) target = $region29
    $region28: #{mlp_forward.1} parent=1 // pred_region
      _
    $region29: #{mlp_forward.1} parent=1 // pred_fallthru
      _
    // Predicated region
    $region30: #{mlp_forward.1} parent=1 // pred_check
      _
    $region31: #{mlp_forward.1} parent=1 // pred_check_branch
      %49 = sbr.rel (0) target = $region33
    $region32: #{mlp_forward.1} parent=1 // pred_region
      %50 = dma.done [#allocation3], 16384
    $region33: #{mlp_forward.1} parent=1 // pred_fallthru
      _
    // Predicated region
    $region34: #{mlp_forward.1} parent=1 // pred_check
      _
    $region35: #{mlp_forward.1} parent=1 // pred_check_branch
      %52 = sbr.rel (0) target = $region37
    $region36: #{mlp_forward.1} parent=1 // pred_region
      %53 = dma.done [#allocation5], 2048
    $region37: #{mlp_forward.1} parent=1 // pred_fallthru
      _
    %v55 = vld [vmem:[%s0] sm:$0xf]
    %v56 = vld [vmem:[%s0 + $0x4] sm:$0xf]
    %v57 = vld [vmem:[%s0 + $0x8] sm:$0xf]
    %v58 = vld [vmem:[%s0 + $0xc] sm:$0xf]
    %v59 = vld [vmem:[%s0 + $0x10] sm:$0xf]
    %v60 = vld [vmem:[%s0 + $0x14] sm:$0xf]
    %v61 = vld [vmem:[%s0 + $0x18] sm:$0xf]
    %v62 = vld [vmem:[%s0 + $0x1c] sm:$0xf]
    %v63 = vld [vmem:[%s1] sm:$0xff]
    %v64 = vld [vmem:[%s1 + $0x8] sm:$0x33]
    %v65 = vld [vmem:[%s2] sm:$0x3]
    %v67 = vlaneseq
    %v68 = vshrl.u32 %v67, 7
    %v69 = vsub.s32 0, %v68
    %v70 = vrot.slane %v65, %v69
    %v71 = vlaneseq
    %v72 = vshrl.u32 %v71, 7
    %v73 = vsub.s32 1, %v72
    %v74 = vrot.slane %v65, %v73
    %v85 = vunpack.c.l.b16 %v55
    %v86 = vunpack.c.l.b16 %v56
    %v87 = vunpack.c.l.b16 %v57
    %v88 = vunpack.c.l.b16 %v58
    %v89 = vunpack.c.l.b16 %v59
    %v90 = vunpack.c.l.b16 %v60
    %v91 = vunpack.c.l.b16 %v61
    %v92 = vunpack.c.l.b16 %v62
    %v93 = vpack.c.b16 %v86, %v85
    %v94 = vpack.c.b16 %v88, %v87
    %v95 = vpack.c.b16 %v90, %v89
    %v96 = vpack.c.b16 %v92, %v91
    %v99 = vunpack.c.l.b16 %v63
    %v100 = vunpack.c.h.b16 %v63
    %v101 = vunpack.c.l.b16 %v64
    %v102 = vunpack.c.h.b16 %v64
    %v103 = vpack.c.b16 %v101, %v99
    %v104 = vpack.c.b16 %v102, %v100
    %vm105 = vcmask 89088
    %v107 = vsel %vm105, %v93, 0
    %v110 = vsel %vm105, %v94, 0
    %v113 = vsel %vm105, %v95, 0
    %v116 = vsel %vm105, %v96, 0
    %vm118 = vcmask 1044480
    %vm119 = vcmask 1045504
    %v120 = vsel %vm118, 4294967295, 65535
    %v121 = vsel %vm119, %v120, 0
    %v123 = vand.u32 %v103, %v121
    %v126 = vand.u32 %v104, %v121
    %128 = vmatprep.subr.bf16.mxu0 %v126
    %129 = vmatpush1.bf16.msra.mxu0 %v123
    %130 = vmatprep.subr.bf16.mxu0 0
    %131 = vmatpush1.bf16.msra.mxu0 0
    %132 = vmatprep.subr.bf16.mxu0 0
    %133 = vmatpush1.bf16.msra.mxu0 0
    %134 = vmatprep.subr.bf16.mxu0 0
    %135 = vmatpush1.bf16.msra.mxu0 0
    %136 = vmatprep.subr.bf16.mxu0 0
    %137 = vmatpush1.bf16.msra.mxu0 0
    %138 = vmatprep.subr.bf16.mxu0 0
    %139 = vmatpush1.bf16.msra.mxu0 0
    %140 = vmatprep.subr.bf16.mxu0 0
    %141 = vmatpush1.bf16.msra.mxu0 0
    %142 = vmatprep.subr.bf16.mxu0 0
    %143 = vmatpush1.bf16.msra.mxu0 0
    %144 = vmatprep.subr.bf16.mxu0 0
    %145 = vmatpush1.bf16.msra.mxu0 0
    %146 = vmatprep.subr.bf16.mxu0 0
    %147 = vmatpush1.bf16.msra.mxu0 0
    %148 = vmatprep.subr.bf16.mxu0 0
    %149 = vmatpush1.bf16.msra.mxu0 0
    %150 = vmatprep.subr.bf16.mxu0 0
    %151 = vmatpush1.bf16.msra.mxu0 0
    %152 = vmatprep.subr.bf16.mxu0 0
    %153 = vmatpush1.bf16.msra.mxu0 0
    %154 = vmatprep.subr.bf16.mxu0 0
    %155 = vmatpush1.bf16.msra.mxu0 0
    %156 = vmatprep.subr.bf16.mxu0 0
    %157 = vmatpush1.bf16.msra.mxu0 0
    %158 = vmatprep.subr.bf16.mxu0 0
    %159 = vmatpush1.bf16.msra.mxu0 0
    %160 = vmatprep.mubr.bf16.mxu0 0
    %161 = vmatmul.mubr.bf16.gmra.mrb[0].mxu0 %v107
    %v162 = vpop.f32.mrb[0].mxu0
    %v163 = vadd.f32 %v70, %v162
    %v164 = vpop.f32.mrb[0].mxu0
    %v165 = vadd.f32 %v74, %v164
    %v166 = vpop.f32.mrb[0].mxu0
    %v167 = vadd.f32 %v70, %v166
    %v168 = vpop.f32.mrb[0].mxu0
    %v169 = vadd.f32 %v74, %v168
    %170 = vmatprep.mubr.bf16.mxu0 0
    %171 = vmatmul.mubr.bf16.gmra.mrb[0].mxu0 %v110
    %v172 = vpop.f32.mrb[0].mxu0
    %v173 = vadd.f32 %v70, %v172
    %v174 = vpop.f32.mrb[0].mxu0
    %v175 = vadd.f32 %v74, %v174
    %v176 = vpop.f32.mrb[0].mxu0
    %v177 = vadd.f32 %v70, %v176
    %v178 = vpop.f32.mrb[0].mxu0
    %v179 = vadd.f32 %v74, %v178
    %180 = vmatprep.mubr.bf16.mxu0 0
    %181 = vmatmul.mubr.bf16.gmra.mrb[0].mxu0 %v113
    %v182 = vpop.f32.mrb[0].mxu0
    %v183 = vadd.f32 %v70, %v182
    %v184 = vpop.f32.mrb[0].mxu0
    %v185 = vadd.f32 %v74, %v184
    %v186 = vpop.f32.mrb[0].mxu0
    %v187 = vadd.f32 %v70, %v186
    %v188 = vpop.f32.mrb[0].mxu0
    %v189 = vadd.f32 %v74, %v188
    %190 = vmatprep.mubr.bf16.mxu0 0
    %191 = vmatmul.mubr.bf16.gmra.mrb[0].mxu0 %v116
    %v192 = vpop.f32.mrb[0].mxu0
    %v193 = vadd.f32 %v70, %v192
    %v194 = vpop.f32.mrb[0].mxu0
    %v195 = vadd.f32 %v74, %v194
    %v196 = vpop.f32.mrb[0].mxu0
    %v197 = vadd.f32 %v70, %v196
    %v198 = vpop.f32.mrb[0].mxu0
    %v199 = vadd.f32 %v74, %v198
    %200 = vdwg.mxu0
    %v201 = vmul.f32 %v163, 0.5
    %v202 = vmul.f32 %v165, 0.5
    %v203 = vmul.f32 %v167, 0.5
    %v204 = vmul.f32 %v169, 0.5
    %v205 = vmul.f32 %v173, 0.5
    %v206 = vmul.f32 %v175, 0.5
    %v207 = vmul.f32 %v177, 0.5
    %v208 = vmul.f32 %v179, 0.5
    %v209 = vmul.f32 %v183, 0.5
    %v210 = vmul.f32 %v185, 0.5
    %v211 = vmul.f32 %v187, 0.5
    %v212 = vmul.f32 %v189, 0.5
    %v213 = vmul.f32 %v193, 0.5
    %v214 = vmul.f32 %v195, 0.5
    %v215 = vmul.f32 %v197, 0.5
    %v216 = vmul.f32 %v199, 0.5
    %v217 = vtanh.pop %v201
    %v218 = vtanh.pop %v202
    %v219 = vtanh.pop %v203
    %v220 = vtanh.pop %v204
    %v221 = vtanh.pop %v205
    %v222 = vtanh.pop %v206
    %v223 = vtanh.pop %v207
    %v224 = vtanh.pop %v208
    %v225 = vtanh.pop %v209
    %v226 = vtanh.pop %v210
    %v227 = vtanh.pop %v211
    %v228 = vtanh.pop %v212
    %v229 = vtanh.pop %v213
    %v230 = vtanh.pop %v214
    %v231 = vtanh.pop %v215
    %v232 = vtanh.pop %v216
    %v233 = vmul.f32 %v217, 0.5
    %v234 = vmul.f32 %v218, 0.5
    %v235 = vmul.f32 %v219, 0.5
    %v236 = vmul.f32 %v220, 0.5
    %v237 = vmul.f32 %v221, 0.5
    %v238 = vmul.f32 %v222, 0.5
    %v239 = vmul.f32 %v223, 0.5
    %v240 = vmul.f32 %v224, 0.5
    %v241 = vmul.f32 %v225, 0.5
    %v242 = vmul.f32 %v226, 0.5
    %v243 = vmul.f32 %v227, 0.5
    %v244 = vmul.f32 %v228, 0.5
    %v245 = vmul.f32 %v229, 0.5
    %v246 = vmul.f32 %v230, 0.5
    %v247 = vmul.f32 %v231, 0.5
    %v248 = vmul.f32 %v232, 0.5
    %v249 = vadd.f32 %v233, 0.5
    %v250 = vadd.f32 %v234, 0.5
    %v251 = vadd.f32 %v235, 0.5
    %v252 = vadd.f32 %v236, 0.5
    %v253 = vadd.f32 %v237, 0.5
    %v254 = vadd.f32 %v238, 0.5
    %v255 = vadd.f32 %v239, 0.5
    %v256 = vadd.f32 %v240, 0.5
    %v257 = vadd.f32 %v241, 0.5
    %v258 = vadd.f32 %v242, 0.5
    %v259 = vadd.f32 %v243, 0.5
    %v260 = vadd.f32 %v244, 0.5
    %v261 = vadd.f32 %v245, 0.5
    %v262 = vadd.f32 %v246, 0.5
    %v263 = vadd.f32 %v247, 0.5
    %v264 = vadd.f32 %v248, 0.5
    %v265 = vmul.f32 %v163, %v249
    %v266 = vmul.f32 %v165, %v250
    %v267 = vmul.f32 %v167, %v251
    %v268 = vmul.f32 %v169, %v252
    %v269 = vmul.f32 %v173, %v253
    %v270 = vmul.f32 %v175, %v254
    %v271 = vmul.f32 %v177, %v255
    %v272 = vmul.f32 %v179, %v256
    %v273 = vmul.f32 %v183, %v257
    %v274 = vmul.f32 %v185, %v258
    %v275 = vmul.f32 %v187, %v259
    %v276 = vmul.f32 %v189, %v260
    %v277 = vmul.f32 %v193, %v261
    %v278 = vmul.f32 %v195, %v262
    %v279 = vmul.f32 %v197, %v263
    %v280 = vmul.f32 %v199, %v264
    %v281 = vpack.c.bf16 %v267, %v265
    %v282 = vpack.c.bf16 %v268, %v266
    %v283 = vpack.c.bf16 %v271, %v269
    %v284 = vpack.c.bf16 %v272, %v270
    %v285 = vpack.c.bf16 %v275, %v273
    %v286 = vpack.c.bf16 %v276, %v274
    %v287 = vpack.c.bf16 %v279, %v277
    %v288 = vpack.c.bf16 %v280, %v278
    %v289 = vld [vmem:[#allocation2] sm:$0xff]
    %v290 = vld [vmem:[#allocation2 + $0x8] sm:$0xff]
    %v291 = vld [vmem:[#allocation2 + $0x10] sm:$0xff]
    %v292 = vld [vmem:[#allocation2 + $0x18] sm:$0xff]
    %v293 = vld [vmem:[#allocation2 + $0x20] sm:$0xff]
    %v294 = vld [vmem:[#allocation2 + $0x28] sm:$0xff]
    %v295 = vld [vmem:[#allocation2 + $0x30] sm:$0xff]
    %v296 = vld [vmem:[#allocation2 + $0x38] sm:$0xff]
    %v297 = vld [vmem:[#allocation2 + $0x40] sm:$0xff]
    %v298 = vld [vmem:[#allocation2 + $0x48] sm:$0xff]
    %v299 = vld [vmem:[#allocation2 + $0x50] sm:$0xff]
    %v300 = vld [vmem:[#allocation2 + $0x58] sm:$0xff]
    %v301 = vld [vmem:[#allocation2 + $0x60] sm:$0xff]
    %v302 = vld [vmem:[#allocation2 + $0x68] sm:$0xff]
    %v303 = vld [vmem:[#allocation2 + $0x70] sm:$0xff]
    %v304 = vld [vmem:[#allocation2 + $0x78] sm:$0xff]
    %v305 = vld [vmem:[#allocation2 + $0x80] sm:$0xff]
    %v306 = vld [vmem:[#allocation2 + $0x88] sm:$0xff]
    %v307 = vld [vmem:[#allocation2 + $0x90] sm:$0xff]
    %v308 = vld [vmem:[#allocation2 + $0x98] sm:$0xff]
    %v309 = vld [vmem:[#allocation2 + $0xa0] sm:$0xff]
    %v310 = vld [vmem:[#allocation2 + $0xa8] sm:$0xff]
    %v311 = vld [vmem:[#allocation2 + $0xb0] sm:$0xff]
    %v312 = vld [vmem:[#allocation2 + $0xb8] sm:$0xff]
    %v313 = vld [vmem:[#allocation2 + $0xc0] sm:$0xff]
    %v314 = vld [vmem:[#allocation2 + $0xc8] sm:$0xff]
    %v315 = vld [vmem:[#allocation2 + $0xd0] sm:$0xff]
    %v316 = vld [vmem:[#allocation2 + $0xd8] sm:$0xff]
    %v317 = vld [vmem:[#allocation2 + $0xe0] sm:$0xff]
    %v318 = vld [vmem:[#allocation2 + $0xe8] sm:$0xff]
    %v319 = vld [vmem:[#allocation2 + $0xf0] sm:$0xff]
    %v320 = vld [vmem:[#allocation2 + $0xf8] sm:$0xff]
    %v321 = vld [vmem:[%s4] sm:$0x3]
    %v323 = vlaneseq
    %v324 = vshrl.u32 %v323, 7
    %v325 = vsub.s32 0, %v324
    %v326 = vrot.slane %v321, %v325
    %v327 = vlaneseq
    %v328 = vshrl.u32 %v327, 7
    %v329 = vsub.s32 1, %v328
    %v330 = vrot.slane %v321, %v329
    %v365 = vunpack.c.l.b16 %v289
    %v366 = vunpack.c.h.b16 %v289
    %v367 = vunpack.c.l.b16 %v290
    %v368 = vunpack.c.h.b16 %v290
    %v369 = vunpack.c.l.b16 %v291
    %v370 = vunpack.c.h.b16 %v291
    %v371 = vunpack.c.l.b16 %v292
    %v372 = vunpack.c.h.b16 %v292
    %v373 = vunpack.c.l.b16 %v293
    %v374 = vunpack.c.h.b16 %v293
    %v375 = vunpack.c.l.b16 %v294
    %v376 = vunpack.c.h.b16 %v294
    %v377 = vunpack.c.l.b16 %v295
    %v378 = vunpack.c.h.b16 %v295
    %v379 = vunpack.c.l.b16 %v296
    %v380 = vunpack.c.h.b16 %v296
    %v381 = vunpack.c.l.b16 %v297
    %v382 = vunpack.c.h.b16 %v297
    %v383 = vunpack.c.l.b16 %v298
    %v384 = vunpack.c.h.b16 %v298
    %v385 = vunpack.c.l.b16 %v299
    %v386 = vunpack.c.h.b16 %v299
    %v387 = vunpack.c.l.b16 %v300
    %v388 = vunpack.c.h.b16 %v300
    %v389 = vunpack.c.l.b16 %v301
    %v390 = vunpack.c.h.b16 %v301
    %v391 = vunpack.c.l.b16 %v302
    %v392 = vunpack.c.h.b16 %v302
    %v393 = vunpack.c.l.b16 %v303
    %v394 = vunpack.c.h.b16 %v303
    %v395 = vunpack.c.l.b16 %v304
    %v396 = vunpack.c.h.b16 %v304
    %v397 = vunpack.c.l.b16 %v305
    %v398 = vunpack.c.h.b16 %v305
    %v399 = vunpack.c.l.b16 %v306
    %v400 = vunpack.c.h.b16 %v306
    %v401 = vunpack.c.l.b16 %v307
    %v402 = vunpack.c.h.b16 %v307
    %v403 = vunpack.c.l.b16 %v308
    %v404 = vunpack.c.h.b16 %v308
    %v405 = vunpack.c.l.b16 %v309
    %v406 = vunpack.c.h.b16 %v309
    %v407 = vunpack.c.l.b16 %v310
    %v408 = vunpack.c.h.b16 %v310
    %v409 = vunpack.c.l.b16 %v311
    %v410 = vunpack.c.h.b16 %v311
    %v411 = vunpack.c.l.b16 %v312
    %v412 = vunpack.c.h.b16 %v312
    %v413 = vunpack.c.l.b16 %v313
    %v414 = vunpack.c.h.b16 %v313
    %v415 = vunpack.c.l.b16 %v314
    %v416 = vunpack.c.h.b16 %v314
    %v417 = vunpack.c.l.b16 %v315
    %v418 = vunpack.c.h.b16 %v315
    %v419 = vunpack.c.l.b16 %v316
    %v420 = vunpack.c.h.b16 %v316
    %v421 = vunpack.c.l.b16 %v317
    %v422 = vunpack.c.h.b16 %v317
    %v423 = vunpack.c.l.b16 %v318
    %v424 = vunpack.c.h.b16 %v318
    %v425 = vunpack.c.l.b16 %v319
    %v426 = vunpack.c.h.b16 %v319
    %v427 = vunpack.c.l.b16 %v320
    %v428 = vunpack.c.h.b16 %v320
    %v429 = vpack.c.b16 %v367, %v365
    %v430 = vpack.c.b16 %v368, %v366
    %v431 = vpack.c.b16 %v371, %v369
    %v432 = vpack.c.b16 %v372, %v370
    %v433 = vpack.c.b16 %v375, %v373
    %v434 = vpack.c.b16 %v376, %v374
    %v435 = vpack.c.b16 %v379, %v377
    %v436 = vpack.c.b16 %v380, %v378
    %v437 = vpack.c.b16 %v383, %v381
    %v438 = vpack.c.b16 %v384, %v382
    %v439 = vpack.c.b16 %v387, %v385
    %v440 = vpack.c.b16 %v388, %v386
    %v441 = vpack.c.b16 %v391, %v389
    %v442 = vpack.c.b16 %v392, %v390
    %v443 = vpack.c.b16 %v395, %v393
    %v444 = vpack.c.b16 %v396, %v394
    %v445 = vpack.c.b16 %v399, %v397
    %v446 = vpack.c.b16 %v400, %v398
    %v447 = vpack.c.b16 %v403, %v401
    %v448 = vpack.c.b16 %v404, %v402
    %v449 = vpack.c.b16 %v407, %v405
    %v450 = vpack.c.b16 %v408, %v406
    %v451 = vpack.c.b16 %v411, %v409
    %v452 = vpack.c.b16 %v412, %v410
    %v453 = vpack.c.b16 %v415, %v413
    %v454 = vpack.c.b16 %v416, %v414
    %v455 = vpack.c.b16 %v419, %v417
    %v456 = vpack.c.b16 %v420, %v418
    %v457 = vpack.c.b16 %v423, %v421
    %v458 = vpack.c.b16 %v424, %v422
    %v459 = vpack.c.b16 %v427, %v425
    %v460 = vpack.c.b16 %v428, %v426
    %493 = vmatprep.subr.bf16.mxu0 %v430
    %494 = vmatpush1.bf16.msra.mxu0 %v429
    %495 = vmatprep.subr.bf16.mxu0 %v432
    %496 = vmatpush1.bf16.msra.mxu0 %v431
    %497 = vmatprep.subr.bf16.mxu0 %v434
    %498 = vmatpush1.bf16.msra.mxu0 %v433
    %499 = vmatprep.subr.bf16.mxu0 %v436
    %500 = vmatpush1.bf16.msra.mxu0 %v435
    %501 = vmatprep.subr.bf16.mxu0 %v438
    %502 = vmatpush1.bf16.msra.mxu0 %v437
    %503 = vmatprep.subr.bf16.mxu0 %v440
    %504 = vmatpush1.bf16.msra.mxu0 %v439
    %505 = vmatprep.subr.bf16.mxu0 %v442
    %506 = vmatpush1.bf16.msra.mxu0 %v441
    %507 = vmatprep.subr.bf16.mxu0 %v444
    %508 = vmatpush1.bf16.msra.mxu0 %v443
    %509 = vmatprep.subr.bf16.mxu0 %v446
    %510 = vmatpush1.bf16.msra.mxu0 %v445
    %511 = vmatprep.subr.bf16.mxu0 %v448
    %512 = vmatpush1.bf16.msra.mxu0 %v447
    %513 = vmatprep.subr.bf16.mxu0 %v450
    %514 = vmatpush1.bf16.msra.mxu0 %v449
    %515 = vmatprep.subr.bf16.mxu0 %v452
    %516 = vmatpush1.bf16.msra.mxu0 %v451
    %517 = vmatprep.subr.bf16.mxu0 %v454
    %518 = vmatpush1.bf16.msra.mxu0 %v453
    %519 = vmatprep.subr.bf16.mxu0 %v456
    %520 = vmatpush1.bf16.msra.mxu0 %v455
    %521 = vmatprep.subr.bf16.mxu0 %v458
    %522 = vmatpush1.bf16.msra.mxu0 %v457
    %523 = vmatprep.subr.bf16.mxu0 %v460
    %524 = vmatpush1.bf16.msra.mxu0 %v459
    %525 = vmatprep.mubr.bf16.mxu0 %v282
    %526 = vmatmul.mubr.bf16.gmra.mrb[0].mxu0 %v281
    %v527 = vpop.f32.mrb[0].mxu0
    %v528 = vadd.f32 %v326, %v527
    %v529 = vpop.f32.mrb[0].mxu0
    %v530 = vadd.f32 %v330, %v529
    %v531 = vpop.f32.mrb[0].mxu0
    %v532 = vadd.f32 %v326, %v531
    %v533 = vpop.f32.mrb[0].mxu0
    %v534 = vadd.f32 %v330, %v533
    %535 = vmatprep.mubr.bf16.mxu0 %v284
    %536 = vmatmul.mubr.bf16.gmra.mrb[0].mxu0 %v283
    %v537 = vpop.f32.mrb[0].mxu0
    %v538 = vadd.f32 %v326, %v537
    %v539 = vpop.f32.mrb[0].mxu0
    %v540 = vadd.f32 %v330, %v539
    %v541 = vpop.f32.mrb[0].mxu0
    %v542 = vadd.f32 %v326, %v541
    %v543 = vpop.f32.mrb[0].mxu0
    %v544 = vadd.f32 %v330, %v543
    %545 = vmatprep.mubr.bf16.mxu0 %v286
    %546 = vmatmul.mubr.bf16.gmra.mrb[0].mxu0 %v285
    %v547 = vpop.f32.mrb[0].mxu0
    %v548 = vadd.f32 %v326, %v547
    %v549 = vpop.f32.mrb[0].mxu0
    %v550 = vadd.f32 %v330, %v549
    %v551 = vpop.f32.mrb[0].mxu0
    %v552 = vadd.f32 %v326, %v551
    %v553 = vpop.f32.mrb[0].mxu0
    %v554 = vadd.f32 %v330, %v553
    %555 = vmatprep.mubr.bf16.mxu0 %v288
    %556 = vmatmul.mubr.bf16.gmra.mrb[0].mxu0 %v287
    %v557 = vpop.f32.mrb[0].mxu0
    %v558 = vadd.f32 %v326, %v557
    %v559 = vpop.f32.mrb[0].mxu0
    %v560 = vadd.f32 %v330, %v559
    %v561 = vpop.f32.mrb[0].mxu0
    %v562 = vadd.f32 %v326, %v561
    %v563 = vpop.f32.mrb[0].mxu0
    %v564 = vadd.f32 %v330, %v563
    %565 = vdwg.mxu0
    %v566 = vmul.f32 %v528, 0.5
    %v567 = vmul.f32 %v530, 0.5
    %v568 = vmul.f32 %v532, 0.5
    %v569 = vmul.f32 %v534, 0.5
    %v570 = vmul.f32 %v538, 0.5
    %v571 = vmul.f32 %v540, 0.5
    %v572 = vmul.f32 %v542, 0.5
    %v573 = vmul.f32 %v544, 0.5
    %v574 = vmul.f32 %v548, 0.5
    %v575 = vmul.f32 %v550, 0.5
    %v576 = vmul.f32 %v552, 0.5
    %v577 = vmul.f32 %v554, 0.5
    %v578 = vmul.f32 %v558, 0.5
    %v579 = vmul.f32 %v560, 0.5
    %v580 = vmul.f32 %v562, 0.5
    %v581 = vmul.f32 %v564, 0.5
    %v582 = vtanh.pop %v566
    %v583 = vtanh.pop %v567
    %v584 = vtanh.pop %v568
    %v585 = vtanh.pop %v569
    %v586 = vtanh.pop %v570
    %v587 = vtanh.pop %v571
    %v588 = vtanh.pop %v572
    %v589 = vtanh.pop %v573
    %v590 = vtanh.pop %v574
    %v591 = vtanh.pop %v575
    %v592 = vtanh.pop %v576
    %v593 = vtanh.pop %v577
    %v594 = vtanh.pop %v578
    %v595 = vtanh.pop %v579
    %v596 = vtanh.pop %v580
    %v597 = vtanh.pop %v581
    %v598 = vmul.f32 %v582, 0.5
    %v599 = vmul.f32 %v583, 0.5
    %v600 = vmul.f32 %v584, 0.5
    %v601 = vmul.f32 %v585, 0.5
    %v602 = vmul.f32 %v586, 0.5
    %v603 = vmul.f32 %v587, 0.5
    %v604 = vmul.f32 %v588, 0.5
    %v605 = vmul.f32 %v589, 0.5
    %v606 = vmul.f32 %v590, 0.5
    %v607 = vmul.f32 %v591, 0.5
    %v608 = vmul.f32 %v592, 0.5
    %v609 = vmul.f32 %v593, 0.5
    %v610 = vmul.f32 %v594, 0.5
    %v611 = vmul.f32 %v595, 0.5
    %v612 = vmul.f32 %v596, 0.5
    %v613 = vmul.f32 %v597, 0.5
    %v614 = vadd.f32 %v598, 0.5
    %v615 = vadd.f32 %v599, 0.5
    %v616 = vadd.f32 %v600, 0.5
    %v617 = vadd.f32 %v601, 0.5
    %v618 = vadd.f32 %v602, 0.5
    %v619 = vadd.f32 %v603, 0.5
    %v620 = vadd.f32 %v604, 0.5
    %v621 = vadd.f32 %v605, 0.5
    %v622 = vadd.f32 %v606, 0.5
    %v623 = vadd.f32 %v607, 0.5
    %v624 = vadd.f32 %v608, 0.5
    %v625 = vadd.f32 %v609, 0.5
    %v626 = vadd.f32 %v610, 0.5
    %v627 = vadd.f32 %v611, 0.5
    %v628 = vadd.f32 %v612, 0.5
    %v629 = vadd.f32 %v613, 0.5
    %v630 = vmul.f32 %v528, %v614
    %v631 = vmul.f32 %v530, %v615
    %v632 = vmul.f32 %v532, %v616
    %v633 = vmul.f32 %v534, %v617
    %v634 = vmul.f32 %v538, %v618
    %v635 = vmul.f32 %v540, %v619
    %v636 = vmul.f32 %v542, %v620
    %v637 = vmul.f32 %v544, %v621
    %v638 = vmul.f32 %v548, %v622
    %v639 = vmul.f32 %v550, %v623
    %v640 = vmul.f32 %v552, %v624
    %v641 = vmul.f32 %v554, %v625
    %v642 = vmul.f32 %v558, %v626
    %v643 = vmul.f32 %v560, %v627
    %v644 = vmul.f32 %v562, %v628
    %v645 = vmul.f32 %v564, %v629
    %v646 = vpack.c.bf16 %v632, %v630
    %v647 = vpack.c.bf16 %v633, %v631
    %v648 = vpack.c.bf16 %v636, %v634
    %v649 = vpack.c.bf16 %v637, %v635
    %v650 = vpack.c.bf16 %v640, %v638
    %v651 = vpack.c.bf16 %v641, %v639
    %v652 = vpack.c.bf16 %v644, %v642
    %v653 = vpack.c.bf16 %v645, %v643
    %s654 = scalar_lea.vmem [#allocation2], 256
    %v655 = vld [vmem:[%s654] sm:$0xff]
    %v656 = vld [vmem:[%s654 + $0x8] sm:$0xff]
    %v657 = vld [vmem:[%s654 + $0x10] sm:$0xff]
    %v658 = vld [vmem:[%s654 + $0x18] sm:$0xff]
    %v659 = vld [vmem:[%s654 + $0x20] sm:$0xff]
    %v660 = vld [vmem:[%s654 + $0x28] sm:$0xff]
    %v661 = vld [vmem:[%s654 + $0x30] sm:$0xff]
    %v662 = vld [vmem:[%s654 + $0x38] sm:$0xff]
    %v663 = vld [vmem:[%s654 + $0x40] sm:$0xff]
    %v664 = vld [vmem:[%s654 + $0x48] sm:$0xff]
    %v665 = vld [vmem:[%s654 + $0x50] sm:$0xff]
    %v666 = vld [vmem:[%s654 + $0x58] sm:$0xff]
    %v667 = vld [vmem:[%s654 + $0x60] sm:$0xff]
    %v668 = vld [vmem:[%s654 + $0x68] sm:$0xff]
    %v669 = vld [vmem:[%s654 + $0x70] sm:$0xff]
    %v670 = vld [vmem:[%s654 + $0x78] sm:$0xff]
    %v671 = vld [vmem:[%s654 + $0x80] sm:$0xff]
    %v672 = vld [vmem:[%s654 + $0x88] sm:$0xff]
    %v673 = vld [vmem:[%s654 + $0x90] sm:$0xff]
    %v674 = vld [vmem:[%s654 + $0x98] sm:$0xff]
    %v675 = vld [vmem:[%s654 + $0xa0] sm:$0xff]
    %v676 = vld [vmem:[%s654 + $0xa8] sm:$0xff]
    %v677 = vld [vmem:[%s654 + $0xb0] sm:$0xff]
    %v678 = vld [vmem:[%s654 + $0xb8] sm:$0xff]
    %v679 = vld [vmem:[%s654 + $0xc0] sm:$0xff]
    %v680 = vld [vmem:[%s654 + $0xc8] sm:$0xff]
    %v681 = vld [vmem:[%s654 + $0xd0] sm:$0xff]
    %v682 = vld [vmem:[%s654 + $0xd8] sm:$0xff]
    %v683 = vld [vmem:[%s654 + $0xe0] sm:$0xff]
    %v684 = vld [vmem:[%s654 + $0xe8] sm:$0xff]
    %v685 = vld [vmem:[%s654 + $0xf0] sm:$0xff]
    %v686 = vld [vmem:[%s654 + $0xf8] sm:$0xff]
    %s687 = scalar_lea.vmem %s4, 2
    %v688 = vld [vmem:[%s687] sm:$0x3]
    %v690 = vlaneseq
    %v691 = vshrl.u32 %v690, 7
    %v692 = vsub.s32 0, %v691
    %v693 = vrot.slane %v688, %v692
    %v694 = vlaneseq
    %v695 = vshrl.u32 %v694, 7
    %v696 = vsub.s32 1, %v695
    %v697 = vrot.slane %v688, %v696
    %v732 = vunpack.c.l.b16 %v655
    %v733 = vunpack.c.h.b16 %v655
    %v734 = vunpack.c.l.b16 %v656
    %v735 = vunpack.c.h.b16 %v656
    %v736 = vunpack.c.l.b16 %v657
    %v737 = vunpack.c.h.b16 %v657
    %v738 = vunpack.c.l.b16 %v658
    %v739 = vunpack.c.h.b16 %v658
    %v740 = vunpack.c.l.b16 %v659
    %v741 = vunpack.c.h.b16 %v659
    %v742 = vunpack.c.l.b16 %v660
    %v743 = vunpack.c.h.b16 %v660
    %v744 = vunpack.c.l.b16 %v661
    %v745 = vunpack.c.h.b16 %v661
    %v746 = vunpack.c.l.b16 %v662
    %v747 = vunpack.c.h.b16 %v662
    %v748 = vunpack.c.l.b16 %v663
    %v749 = vunpack.c.h.b16 %v663
    %v750 = vunpack.c.l.b16 %v664
    %v751 = vunpack.c.h.b16 %v664
    %v752 = vunpack.c.l.b16 %v665
    %v753 = vunpack.c.h.b16 %v665
    %v754 = vunpack.c.l.b16 %v666
    %v755 = vunpack.c.h.b16 %v666
    %v756 = vunpack.c.l.b16 %v667
    %v757 = vunpack.c.h.b16 %v667
    %v758 = vunpack.c.l.b16 %v668
    %v759 = vunpack.c.h.b16 %v668
    %v760 = vunpack.c.l.b16 %v669
    %v761 = vunpack.c.h.b16 %v669
    %v762 = vunpack.c.l.b16 %v670
    %v763 = vunpack.c.h.b16 %v670
    %v764 = vunpack.c.l.b16 %v671
    %v765 = vunpack.c.h.b16 %v671
    %v766 = vunpack.c.l.b16 %v672
    %v767 = vunpack.c.h.b16 %v672
    %v768 = vunpack.c.l.b16 %v673
    %v769 = vunpack.c.h.b16 %v673
    %v770 = vunpack.c.l.b16 %v674
    %v771 = vunpack.c.h.b16 %v674
    %v772 = vunpack.c.l.b16 %v675
    %v773 = vunpack.c.h.b16 %v675
    %v774 = vunpack.c.l.b16 %v676
    %v775 = vunpack.c.h.b16 %v676
    %v776 = vunpack.c.l.b16 %v677
    %v777 = vunpack.c.h.b16 %v677
    %v778 = vunpack.c.l.b16 %v678
    %v779 = vunpack.c.h.b16 %v678
    %v780 = vunpack.c.l.b16 %v679
    %v781 = vunpack.c.h.b16 %v679
    %v782 = vunpack.c.l.b16 %v680
    %v783 = vunpack.c.h.b16 %v680
    %v784 = vunpack.c.l.b16 %v681
    %v785 = vunpack.c.h.b16 %v681
    %v786 = vunpack.c.l.b16 %v682
    %v787 = vunpack.c.h.b16 %v682
    %v788 = vunpack.c.l.b16 %v683
    %v789 = vunpack.c.h.b16 %v683
    %v790 = vunpack.c.l.b16 %v684
    %v791 = vunpack.c.h.b16 %v684
    %v792 = vunpack.c.l.b16 %v685
    %v793 = vunpack.c.h.b16 %v685
    %v794 = vunpack.c.l.b16 %v686
    %v795 = vunpack.c.h.b16 %v686
    %v796 = vpack.c.b16 %v734, %v732
    %v797 = vpack.c.b16 %v735, %v733
    %v798 = vpack.c.b16 %v738, %v736
    %v799 = vpack.c.b16 %v739, %v737
    %v800 = vpack.c.b16 %v742, %v740
    %v801 = vpack.c.b16 %v743, %v741
    %v802 = vpack.c.b16 %v746, %v744
    %v803 = vpack.c.b16 %v747, %v745
    %v804 = vpack.c.b16 %v750, %v748
    %v805 = vpack.c.b16 %v751, %v749
    %v806 = vpack.c.b16 %v754, %v752
    %v807 = vpack.c.b16 %v755, %v753
    %v808 = vpack.c.b16 %v758, %v756
    %v809 = vpack.c.b16 %v759, %v757
    %v810 = vpack.c.b16 %v762, %v760
    %v811 = vpack.c.b16 %v763, %v761
    %v812 = vpack.c.b16 %v766, %v764
    %v813 = vpack.c.b16 %v767, %v765
    %v814 = vpack.c.b16 %v770, %v768
    %v815 = vpack.c.b16 %v771, %v769
    %v816 = vpack.c.b16 %v774, %v772
    %v817 = vpack.c.b16 %v775, %v773
    %v818 = vpack.c.b16 %v778, %v776
    %v819 = vpack.c.b16 %v779, %v777
    %v820 = vpack.c.b16 %v782, %v780
    %v821 = vpack.c.b16 %v783, %v781
    %v822 = vpack.c.b16 %v786, %v784
    %v823 = vpack.c.b16 %v787, %v785
    %v824 = vpack.c.b16 %v790, %v788
    %v825 = vpack.c.b16 %v791, %v789
    %v826 = vpack.c.b16 %v794, %v792
    %v827 = vpack.c.b16 %v795, %v793
    %860 = vmatprep.subr.bf16.mxu0 %v797
    %861 = vmatpush1.bf16.msra.mxu0 %v796
    %862 = vmatprep.subr.bf16.mxu0 %v799
    %863 = vmatpush1.bf16.msra.mxu0 %v798
    %864 = vmatprep.subr.bf16.mxu0 %v801
    %865 = vmatpush1.bf16.msra.mxu0 %v800
    %866 = vmatprep.subr.bf16.mxu0 %v803
    %867 = vmatpush1.bf16.msra.mxu0 %v802
    %868 = vmatprep.subr.bf16.mxu0 %v805
    %869 = vmatpush1.bf16.msra.mxu0 %v804
    %870 = vmatprep.subr.bf16.mxu0 %v807
    %871 = vmatpush1.bf16.msra.mxu0 %v806
    %872 = vmatprep.subr.bf16.mxu0 %v809
    %873 = vmatpush1.bf16.msra.mxu0 %v808
    %874 = vmatprep.subr.bf16.mxu0 %v811
    %875 = vmatpush1.bf16.msra.mxu0 %v810
    %876 = vmatprep.subr.bf16.mxu0 %v813
    %877 = vmatpush1.bf16.msra.mxu0 %v812
    %878 = vmatprep.subr.bf16.mxu0 %v815
    %879 = vmatpush1.bf16.msra.mxu0 %v814
    %880 = vmatprep.subr.bf16.mxu0 %v817
    %881 = vmatpush1.bf16.msra.mxu0 %v816
    %882 = vmatprep.subr.bf16.mxu0 %v819
    %883 = vmatpush1.bf16.msra.mxu0 %v818
    %884 = vmatprep.subr.bf16.mxu0 %v821
    %885 = vmatpush1.bf16.msra.mxu0 %v820
    %886 = vmatprep.subr.bf16.mxu0 %v823
    %887 = vmatpush1.bf16.msra.mxu0 %v822
    %888 = vmatprep.subr.bf16.mxu0 %v825
    %889 = vmatpush1.bf16.msra.mxu0 %v824
    %890 = vmatprep.subr.bf16.mxu0 %v827
    %891 = vmatpush1.bf16.msra.mxu0 %v826
    %892 = vmatprep.mubr.bf16.mxu0 %v647
    %893 = vmatmul.mubr.bf16.gmra.mrb[0].mxu0 %v646
    %v894 = vpop.f32.mrb[0].mxu0
    %v895 = vadd.f32 %v693, %v894
    %v896 = vpop.f32.mrb[0].mxu0
    %v897 = vadd.f32 %v697, %v896
    %v898 = vpop.f32.mrb[0].mxu0
    %v899 = vadd.f32 %v693, %v898
    %v900 = vpop.f32.mrb[0].mxu0
    %v901 = vadd.f32 %v697, %v900
    %902 = vmatprep.mubr.bf16.mxu0 %v649
    %903 = vmatmul.mubr.bf16.gmra.mrb[0].mxu0 %v648
    %v904 = vpop.f32.mrb[0].mxu0
    %v905 = vadd.f32 %v693, %v904
    %v906 = vpop.f32.mrb[0].mxu0
    %v907 = vadd.f32 %v697, %v906
    %v908 = vpop.f32.mrb[0].mxu0
    %v909 = vadd.f32 %v693, %v908
    %v910 = vpop.f32.mrb[0].mxu0
    %v911 = vadd.f32 %v697, %v910
    %912 = vmatprep.mubr.bf16.mxu0 %v651
    %913 = vmatmul.mubr.bf16.gmra.mrb[0].mxu0 %v650
    %v914 = vpop.f32.mrb[0].mxu0
    %v915 = vadd.f32 %v693, %v914
    %v916 = vpop.f32.mrb[0].mxu0
    %v917 = vadd.f32 %v697, %v916
    %v918 = vpop.f32.mrb[0].mxu0
    %v919 = vadd.f32 %v693, %v918
    %v920 = vpop.f32.mrb[0].mxu0
    %v921 = vadd.f32 %v697, %v920
    %922 = vmatprep.mubr.bf16.mxu0 %v653
    %923 = vmatmul.mubr.bf16.gmra.mrb[0].mxu0 %v652
    %v924 = vpop.f32.mrb[0].mxu0
    %v925 = vadd.f32 %v693, %v924
    %v926 = vpop.f32.mrb[0].mxu0
    %v927 = vadd.f32 %v697, %v926
    %v928 = vpop.f32.mrb[0].mxu0
    %v929 = vadd.f32 %v693, %v928
    %v930 = vpop.f32.mrb[0].mxu0
    %v931 = vadd.f32 %v697, %v930
    %932 = vdwg.mxu0
    %v933 = vmul.f32 %v895, 0.5
    %v934 = vmul.f32 %v897, 0.5
    %v935 = vmul.f32 %v899, 0.5
    %v936 = vmul.f32 %v901, 0.5
    %v937 = vmul.f32 %v905, 0.5
    %v938 = vmul.f32 %v907, 0.5
    %v939 = vmul.f32 %v909, 0.5
    %v940 = vmul.f32 %v911, 0.5
    %v941 = vmul.f32 %v915, 0.5
    %v942 = vmul.f32 %v917, 0.5
    %v943 = vmul.f32 %v919, 0.5
    %v944 = vmul.f32 %v921, 0.5
    %v945 = vmul.f32 %v925, 0.5
    %v946 = vmul.f32 %v927, 0.5
    %v947 = vmul.f32 %v929, 0.5
    %v948 = vmul.f32 %v931, 0.5
    %v949 = vtanh.pop %v933
    %v950 = vtanh.pop %v934
    %v951 = vtanh.pop %v935
    %v952 = vtanh.pop %v936
    %v953 = vtanh.pop %v937
    %v954 = vtanh.pop %v938
    %v955 = vtanh.pop %v939
    %v956 = vtanh.pop %v940
    %v957 = vtanh.pop %v941
    %v958 = vtanh.pop %v942
    %v959 = vtanh.pop %v943
    %v960 = vtanh.pop %v944
    %v961 = vtanh.pop %v945
    %v962 = vtanh.pop %v946
    %v963 = vtanh.pop %v947
    %v964 = vtanh.pop %v948
    %v965 = vmul.f32 %v949, 0.5
    %v966 = vmul.f32 %v950, 0.5
    %v967 = vmul.f32 %v951, 0.5
    %v968 = vmul.f32 %v952, 0.5
    %v969 = vmul.f32 %v953, 0.5
    %v970 = vmul.f32 %v954, 0.5
    %v971 = vmul.f32 %v955, 0.5
    %v972 = vmul.f32 %v956, 0.5
    %v973 = vmul.f32 %v957, 0.5
    %v974 = vmul.f32 %v958, 0.5
    %v975 = vmul.f32 %v959, 0.5
    %v976 = vmul.f32 %v960, 0.5
    %v977 = vmul.f32 %v961, 0.5
    %v978 = vmul.f32 %v962, 0.5
    %v979 = vmul.f32 %v963, 0.5
    %v980 = vmul.f32 %v964, 0.5
    %v981 = vadd.f32 %v965, 0.5
    %v982 = vadd.f32 %v966, 0.5
    %v983 = vadd.f32 %v967, 0.5
    %v984 = vadd.f32 %v968, 0.5
    %v985 = vadd.f32 %v969, 0.5
    %v986 = vadd.f32 %v970, 0.5
    %v987 = vadd.f32 %v971, 0.5
    %v988 = vadd.f32 %v972, 0.5
    %v989 = vadd.f32 %v973, 0.5
    %v990 = vadd.f32 %v974, 0.5
    %v991 = vadd.f32 %v975, 0.5
    %v992 = vadd.f32 %v976, 0.5
    %v993 = vadd.f32 %v977, 0.5
    %v994 = vadd.f32 %v978, 0.5
    %v995 = vadd.f32 %v979, 0.5
    %v996 = vadd.f32 %v980, 0.5
    %v997 = vmul.f32 %v895, %v981
    %v998 = vmul.f32 %v897, %v982
    %v999 = vmul.f32 %v899, %v983
    %v1000 = vmul.f32 %v901, %v984
    %v1001 = vmul.f32 %v905, %v985
    %v1002 = vmul.f32 %v907, %v986
    %v1003 = vmul.f32 %v909, %v987
    %v1004 = vmul.f32 %v911, %v988
    %v1005 = vmul.f32 %v915, %v989
    %v1006 = vmul.f32 %v917, %v990
    %v1007 = vmul.f32 %v919, %v991
    %v1008 = vmul.f32 %v921, %v992
    %v1009 = vmul.f32 %v925, %v993
    %v1010 = vmul.f32 %v927, %v994
    %v1011 = vmul.f32 %v929, %v995
    %v1012 = vmul.f32 %v931, %v996
    %v1013 = vpack.c.bf16 %v999, %v997
    %v1014 = vpack.c.bf16 %v1000, %v998
    %v1015 = vpack.c.bf16 %v1003, %v1001
    %v1016 = vpack.c.bf16 %v1004, %v1002
    %v1017 = vpack.c.bf16 %v1007, %v1005
    %v1018 = vpack.c.bf16 %v1008, %v1006
    %v1019 = vpack.c.bf16 %v1011, %v1009
    %v1020 = vpack.c.bf16 %v1012, %v1010
    %s1021 = scalar_lea.vmem [#allocation2], 512
    %v1022 = vld [vmem:[%s1021] sm:$0xff]
    %v1023 = vld [vmem:[%s1021 + $0x8] sm:$0xff]
    %v1024 = vld [vmem:[%s1021 + $0x10] sm:$0xff]
    %v1025 = vld [vmem:[%s1021 + $0x18] sm:$0xff]
    %v1026 = vld [vmem:[%s1021 + $0x20] sm:$0xff]
    %v1027 = vld [vmem:[%s1021 + $0x28] sm:$0xff]
    %v1028 = vld [vmem:[%s1021 + $0x30] sm:$0xff]
    %v1029 = vld [vmem:[%s1021 + $0x38] sm:$0xff]
    %v1030 = vld [vmem:[%s1021 + $0x40] sm:$0xff]
    %v1031 = vld [vmem:[%s1021 + $0x48] sm:$0xff]
    %v1032 = vld [vmem:[%s1021 + $0x50] sm:$0xff]
    %v1033 = vld [vmem:[%s1021 + $0x58] sm:$0xff]
    %v1034 = vld [vmem:[%s1021 + $0x60] sm:$0xff]
    %v1035 = vld [vmem:[%s1021 + $0x68] sm:$0xff]
    %v1036 = vld [vmem:[%s1021 + $0x70] sm:$0xff]
    %v1037 = vld [vmem:[%s1021 + $0x78] sm:$0xff]
    %v1038 = vld [vmem:[%s1021 + $0x80] sm:$0xff]
    %v1039 = vld [vmem:[%s1021 + $0x88] sm:$0xff]
    %v1040 = vld [vmem:[%s1021 + $0x90] sm:$0xff]
    %v1041 = vld [vmem:[%s1021 + $0x98] sm:$0xff]
    %v1042 = vld [vmem:[%s1021 + $0xa0] sm:$0xff]
    %v1043 = vld [vmem:[%s1021 + $0xa8] sm:$0xff]
    %v1044 = vld [vmem:[%s1021 + $0xb0] sm:$0xff]
    %v1045 = vld [vmem:[%s1021 + $0xb8] sm:$0xff]
    %v1046 = vld [vmem:[%s1021 + $0xc0] sm:$0xff]
    %v1047 = vld [vmem:[%s1021 + $0xc8] sm:$0xff]
    %v1048 = vld [vmem:[%s1021 + $0xd0] sm:$0xff]
    %v1049 = vld [vmem:[%s1021 + $0xd8] sm:$0xff]
    %v1050 = vld [vmem:[%s1021 + $0xe0] sm:$0xff]
    %v1051 = vld [vmem:[%s1021 + $0xe8] sm:$0xff]
    %v1052 = vld [vmem:[%s1021 + $0xf0] sm:$0xff]
    %v1053 = vld [vmem:[%s1021 + $0xf8] sm:$0xff]
    %s1054 = scalar_lea.vmem %s4, 4
    %v1055 = vld [vmem:[%s1054] sm:$0x3]
    %v1057 = vlaneseq
    %v1058 = vshrl.u32 %v1057, 7
    %v1059 = vsub.s32 0, %v1058
    %v1060 = vrot.slane %v1055, %v1059
    %v1061 = vlaneseq
    %v1062 = vshrl.u32 %v1061, 7
    %v1063 = vsub.s32 1, %v1062
    %v1064 = vrot.slane %v1055, %v1063
    %v1099 = vunpack.c.l.b16 %v1022
    %v1100 = vunpack.c.h.b16 %v1022
    %v1101 = vunpack.c.l.b16 %v1023
    %v1102 = vunpack.c.h.b16 %v1023
    %v1103 = vunpack.c.l.b16 %v1024
    %v1104 = vunpack.c.h.b16 %v1024
    %v1105 = vunpack.c.l.b16 %v1025
    %v1106 = vunpack.c.h.b16 %v1025
    %v1107 = vunpack.c.l.b16 %v1026
    %v1108 = vunpack.c.h.b16 %v1026
    %v1109 = vunpack.c.l.b16 %v1027
    %v1110 = vunpack.c.h.b16 %v1027
    %v1111 = vunpack.c.l.b16 %v1028
    %v1112 = vunpack.c.h.b16 %v1028
    %v1113 = vunpack.c.l.b16 %v1029
    %v1114 = vunpack.c.h.b16 %v1029
    %v1115 = vunpack.c.l.b16 %v1030
    %v1116 = vunpack.c.h.b16 %v1030
    %v1117 = vunpack.c.l.b16 %v1031
    %v1118 = vunpack.c.h.b16 %v1031
    %v1119 = vunpack.c.l.b16 %v1032
    %v1120 = vunpack.c.h.b16 %v1032
    %v1121 = vunpack.c.l.b16 %v1033
    %v1122 = vunpack.c.h.b16 %v1033
    %v1123 = vunpack.c.l.b16 %v1034
    %v1124 = vunpack.c.h.b16 %v1034
    %v1125 = vunpack.c.l.b16 %v1035
    %v1126 = vunpack.c.h.b16 %v1035
    %v1127 = vunpack.c.l.b16 %v1036
    %v1128 = vunpack.c.h.b16 %v1036
    %v1129 = vunpack.c.l.b16 %v1037
    %v1130 = vunpack.c.h.b16 %v1037
    %v1131 = vunpack.c.l.b16 %v1038
    %v1132 = vunpack.c.h.b16 %v1038
    %v1133 = vunpack.c.l.b16 %v1039
    %v1134 = vunpack.c.h.b16 %v1039
    %v1135 = vunpack.c.l.b16 %v1040
    %v1136 = vunpack.c.h.b16 %v1040
    %v1137 = vunpack.c.l.b16 %v1041
    %v1138 = vunpack.c.h.b16 %v1041
    %v1139 = vunpack.c.l.b16 %v1042
    %v1140 = vunpack.c.h.b16 %v1042
    %v1141 = vunpack.c.l.b16 %v1043
    %v1142 = vunpack.c.h.b16 %v1043
    %v1143 = vunpack.c.l.b16 %v1044
    %v1144 = vunpack.c.h.b16 %v1044
    %v1145 = vunpack.c.l.b16 %v1045
    %v1146 = vunpack.c.h.b16 %v1045
    %v1147 = vunpack.c.l.b16 %v1046
    %v1148 = vunpack.c.h.b16 %v1046
    %v1149 = vunpack.c.l.b16 %v1047
    %v1150 = vunpack.c.h.b16 %v1047
    %v1151 = vunpack.c.l.b16 %v1048
    %v1152 = vunpack.c.h.b16 %v1048
    %v1153 = vunpack.c.l.b16 %v1049
    %v1154 = vunpack.c.h.b16 %v1049
    %v1155 = vunpack.c.l.b16 %v1050
    %v1156 = vunpack.c.h.b16 %v1050
    %v1157 = vunpack.c.l.b16 %v1051
    %v1158 = vunpack.c.h.b16 %v1051
    %v1159 = vunpack.c.l.b16 %v1052
    %v1160 = vunpack.c.h.b16 %v1052
    %v1161 = vunpack.c.l.b16 %v1053
    %v1162 = vunpack.c.h.b16 %v1053
    %v1163 = vpack.c.b16 %v1101, %v1099
    %v1164 = vpack.c.b16 %v1102, %v1100
    %v1165 = vpack.c.b16 %v1105, %v1103
    %v1166 = vpack.c.b16 %v1106, %v1104
    %v1167 = vpack.c.b16 %v1109, %v1107
    %v1168 = vpack.c.b16 %v1110, %v1108
    %v1169 = vpack.c.b16 %v1113, %v1111
    %v1170 = vpack.c.b16 %v1114, %v1112
    %v1171 = vpack.c.b16 %v1117, %v1115
    %v1172 = vpack.c.b16 %v1118, %v1116
    %v1173 = vpack.c.b16 %v1121, %v1119
    %v1174 = vpack.c.b16 %v1122, %v1120
    %v1175 = vpack.c.b16 %v1125, %v1123
    %v1176 = vpack.c.b16 %v1126, %v1124
    %v1177 = vpack.c.b16 %v1129, %v1127
    %v1178 = vpack.c.b16 %v1130, %v1128
    %v1179 = vpack.c.b16 %v1133, %v1131
    %v1180 = vpack.c.b16 %v1134, %v1132
    %v1181 = vpack.c.b16 %v1137, %v1135
    %v1182 = vpack.c.b16 %v1138, %v1136
    %v1183 = vpack.c.b16 %v1141, %v1139
    %v1184 = vpack.c.b16 %v1142, %v1140
    %v1185 = vpack.c.b16 %v1145, %v1143
    %v1186 = vpack.c.b16 %v1146, %v1144
    %v1187 = vpack.c.b16 %v1149, %v1147
    %v1188 = vpack.c.b16 %v1150, %v1148
    %v1189 = vpack.c.b16 %v1153, %v1151
    %v1190 = vpack.c.b16 %v1154, %v1152
    %v1191 = vpack.c.b16 %v1157, %v1155
    %v1192 = vpack.c.b16 %v1158, %v1156
    %v1193 = vpack.c.b16 %v1161, %v1159
    %v1194 = vpack.c.b16 %v1162, %v1160
    %1227 = vmatprep.subr.bf16.mxu0 %v1164
    %1228 = vmatpush1.bf16.msra.mxu0 %v1163
    %1229 = vmatprep.subr.bf16.mxu0 %v1166
    %1230 = vmatpush1.bf16.msra.mxu0 %v1165
    %1231 = vmatprep.subr.bf16.mxu0 %v1168
    %1232 = vmatpush1.bf16.msra.mxu0 %v1167
    %1233 = vmatprep.subr.bf16.mxu0 %v1170
    %1234 = vmatpush1.bf16.msra.mxu0 %v1169
    %1235 = vmatprep.subr.bf16.mxu0 %v1172
    %1236 = vmatpush1.bf16.msra.mxu0 %v1171
    %1237 = vmatprep.subr.bf16.mxu0 %v1174
    %1238 = vmatpush1.bf16.msra.mxu0 %v1173
    %1239 = vmatprep.subr.bf16.mxu0 %v1176
    %1240 = vmatpush1.bf16.msra.mxu0 %v1175
    %1241 = vmatprep.subr.bf16.mxu0 %v1178
    %1242 = vmatpush1.bf16.msra.mxu0 %v1177
    %1243 = vmatprep.subr.bf16.mxu0 %v1180
    %1244 = vmatpush1.bf16.msra.mxu0 %v1179
    %1245 = vmatprep.subr.bf16.mxu0 %v1182
    %1246 = vmatpush1.bf16.msra.mxu0 %v1181
    %1247 = vmatprep.subr.bf16.mxu0 %v1184
    %1248 = vmatpush1.bf16.msra.mxu0 %v1183
    %1249 = vmatprep.subr.bf16.mxu0 %v1186
    %1250 = vmatpush1.bf16.msra.mxu0 %v1185
    %1251 = vmatprep.subr.bf16.mxu0 %v1188
    %1252 = vmatpush1.bf16.msra.mxu0 %v1187
    %1253 = vmatprep.subr.bf16.mxu0 %v1190
    %1254 = vmatpush1.bf16.msra.mxu0 %v1189
    %1255 = vmatprep.subr.bf16.mxu0 %v1192
    %1256 = vmatpush1.bf16.msra.mxu0 %v1191
    %1257 = vmatprep.subr.bf16.mxu0 %v1194
    %1258 = vmatpush1.bf16.msra.mxu0 %v1193
    %1259 = vmatprep.mubr.bf16.mxu0 %v1014
    %1260 = vmatmul.mubr.bf16.gmra.mrb[0].mxu0 %v1013
    %v1261 = vpop.f32.mrb[0].mxu0
    %v1262 = vadd.f32 %v1060, %v1261
    %v1263 = vpop.f32.mrb[0].mxu0
    %v1264 = vadd.f32 %v1064, %v1263
    %v1265 = vpop.f32.mrb[0].mxu0
    %v1266 = vadd.f32 %v1060, %v1265
    %v1267 = vpop.f32.mrb[0].mxu0
    %v1268 = vadd.f32 %v1064, %v1267
    %1269 = vmatprep.mubr.bf16.mxu0 %v1016
    %1270 = vmatmul.mubr.bf16.gmra.mrb[0].mxu0 %v1015
    %v1271 = vpop.f32.mrb[0].mxu0
    %v1272 = vadd.f32 %v1060, %v1271
    %v1273 = vpop.f32.mrb[0].mxu0
    %v1274 = vadd.f32 %v1064, %v1273
    %v1275 = vpop.f32.mrb[0].mxu0
    %v1276 = vadd.f32 %v1060, %v1275
    %v1277 = vpop.f32.mrb[0].mxu0
    %v1278 = vadd.f32 %v1064, %v1277
    %1279 = vmatprep.mubr.bf16.mxu0 %v1018
    %1280 = vmatmul.mubr.bf16.gmra.mrb[0].mxu0 %v1017
    %v1281 = vpop.f32.mrb[0].mxu0
    %v1282 = vadd.f32 %v1060, %v1281
    %v1283 = vpop.f32.mrb[0].mxu0
    %v1284 = vadd.f32 %v1064, %v1283
    %v1285 = vpop.f32.mrb[0].mxu0
    %v1286 = vadd.f32 %v1060, %v1285
    %v1287 = vpop.f32.mrb[0].mxu0
    %v1288 = vadd.f32 %v1064, %v1287
    %1289 = vmatprep.mubr.bf16.mxu0 %v1020
    %1290 = vmatmul.mubr.bf16.gmra.mrb[0].mxu0 %v1019
    %v1291 = vpop.f32.mrb[0].mxu0
    %v1292 = vadd.f32 %v1060, %v1291
    %v1293 = vpop.f32.mrb[0].mxu0
    %v1294 = vadd.f32 %v1064, %v1293
    %v1295 = vpop.f32.mrb[0].mxu0
    %v1296 = vadd.f32 %v1060, %v1295
    %v1297 = vpop.f32.mrb[0].mxu0
    %v1298 = vadd.f32 %v1064, %v1297
    %1299 = vdwg.mxu0
    %v1300 = vmul.f32 %v1262, 0.5
    %v1301 = vmul.f32 %v1264, 0.5
    %v1302 = vmul.f32 %v1266, 0.5
    %v1303 = vmul.f32 %v1268, 0.5
    %v1304 = vmul.f32 %v1272, 0.5
    %v1305 = vmul.f32 %v1274, 0.5
    %v1306 = vmul.f32 %v1276, 0.5
    %v1307 = vmul.f32 %v1278, 0.5
    %v1308 = vmul.f32 %v1282, 0.5
    %v1309 = vmul.f32 %v1284, 0.5
    %v1310 = vmul.f32 %v1286, 0.5
    %v1311 = vmul.f32 %v1288, 0.5
    %v1312 = vmul.f32 %v1292, 0.5
    %v1313 = vmul.f32 %v1294, 0.5
    %v1314 = vmul.f32 %v1296, 0.5
    %v1315 = vmul.f32 %v1298, 0.5
    %v1316 = vtanh.pop %v1300
    %v1317 = vtanh.pop %v1301
    %v1318 = vtanh.pop %v1302
    %v1319 = vtanh.pop %v1303
    %v1320 = vtanh.pop %v1304
    %v1321 = vtanh.pop %v1305
    %v1322 = vtanh.pop %v1306
    %v1323 = vtanh.pop %v1307
    %v1324 = vtanh.pop %v1308
    %v1325 = vtanh.pop %v1309
    %v1326 = vtanh.pop %v1310
    %v1327 = vtanh.pop %v1311
    %v1328 = vtanh.pop %v1312
    %v1329 = vtanh.pop %v1313
    %v1330 = vtanh.pop %v1314
    %v1331 = vtanh.pop %v1315
    %v1332 = vmul.f32 %v1316, 0.5
    %v1333 = vmul.f32 %v1317, 0.5
    %v1334 = vmul.f32 %v1318, 0.5
    %v1335 = vmul.f32 %v1319, 0.5
    %v1336 = vmul.f32 %v1320, 0.5
    %v1337 = vmul.f32 %v1321, 0.5
    %v1338 = vmul.f32 %v1322, 0.5
    %v1339 = vmul.f32 %v1323, 0.5
    %v1340 = vmul.f32 %v1324, 0.5
    %v1341 = vmul.f32 %v1325, 0.5
    %v1342 = vmul.f32 %v1326, 0.5
    %v1343 = vmul.f32 %v1327, 0.5
    %v1344 = vmul.f32 %v1328, 0.5
    %v1345 = vmul.f32 %v1329, 0.5
    %v1346 = vmul.f32 %v1330, 0.5
    %v1347 = vmul.f32 %v1331, 0.5
    %v1348 = vadd.f32 %v1332, 0.5
    %v1349 = vadd.f32 %v1333, 0.5
    %v1350 = vadd.f32 %v1334, 0.5
    %v1351 = vadd.f32 %v1335, 0.5
    %v1352 = vadd.f32 %v1336, 0.5
    %v1353 = vadd.f32 %v1337, 0.5
    %v1354 = vadd.f32 %v1338, 0.5
    %v1355 = vadd.f32 %v1339, 0.5
    %v1356 = vadd.f32 %v1340, 0.5
    %v1357 = vadd.f32 %v1341, 0.5
    %v1358 = vadd.f32 %v1342, 0.5
    %v1359 = vadd.f32 %v1343, 0.5
    %v1360 = vadd.f32 %v1344, 0.5
    %v1361 = vadd.f32 %v1345, 0.5
    %v1362 = vadd.f32 %v1346, 0.5
    %v1363 = vadd.f32 %v1347, 0.5
    %v1364 = vmul.f32 %v1262, %v1348
    %v1365 = vmul.f32 %v1264, %v1349
    %v1366 = vmul.f32 %v1266, %v1350
    %v1367 = vmul.f32 %v1268, %v1351
    %v1368 = vmul.f32 %v1272, %v1352
    %v1369 = vmul.f32 %v1274, %v1353
    %v1370 = vmul.f32 %v1276, %v1354
    %v1371 = vmul.f32 %v1278, %v1355
    %v1372 = vmul.f32 %v1282, %v1356
    %v1373 = vmul.f32 %v1284, %v1357
    %v1374 = vmul.f32 %v1286, %v1358
    %v1375 = vmul.f32 %v1288, %v1359
    %v1376 = vmul.f32 %v1292, %v1360
    %v1377 = vmul.f32 %v1294, %v1361
    %v1378 = vmul.f32 %v1296, %v1362
    %v1379 = vmul.f32 %v1298, %v1363
    %v1380 = vpack.c.bf16 %v1366, %v1364
    %v1381 = vpack.c.bf16 %v1367, %v1365
    %v1382 = vpack.c.bf16 %v1370, %v1368
    %v1383 = vpack.c.bf16 %v1371, %v1369
    %v1384 = vpack.c.bf16 %v1374, %v1372
    %v1385 = vpack.c.bf16 %v1375, %v1373
    %v1386 = vpack.c.bf16 %v1378, %v1376
    %v1387 = vpack.c.bf16 %v1379, %v1377
    %s1388 = scalar_lea.vmem [#allocation2], 768
    %v1389 = vld [vmem:[%s1388] sm:$0xff]
    %v1390 = vld [vmem:[%s1388 + $0x8] sm:$0xff]
    %v1391 = vld [vmem:[%s1388 + $0x10] sm:$0xff]
    %v1392 = vld [vmem:[%s1388 + $0x18] sm:$0xff]
    %v1393 = vld [vmem:[%s1388 + $0x20] sm:$0xff]
    %v1394 = vld [vmem:[%s1388 + $0x28] sm:$0xff]
    %v1395 = vld [vmem:[%s1388 + $0x30] sm:$0xff]
    %v1396 = vld [vmem:[%s1388 + $0x38] sm:$0xff]
    %v1397 = vld [vmem:[%s1388 + $0x40] sm:$0xff]
    %v1398 = vld [vmem:[%s1388 + $0x48] sm:$0xff]
    %v1399 = vld [vmem:[%s1388 + $0x50] sm:$0xff]
    %v1400 = vld [vmem:[%s1388 + $0x58] sm:$0xff]
    %v1401 = vld [vmem:[%s1388 + $0x60] sm:$0xff]
    %v1402 = vld [vmem:[%s1388 + $0x68] sm:$0xff]
    %v1403 = vld [vmem:[%s1388 + $0x70] sm:$0xff]
    %v1404 = vld [vmem:[%s1388 + $0x78] sm:$0xff]
    %v1405 = vld [vmem:[%s1388 + $0x80] sm:$0xff]
    %v1406 = vld [vmem:[%s1388 + $0x88] sm:$0xff]
    %v1407 = vld [vmem:[%s1388 + $0x90] sm:$0xff]
    %v1408 = vld [vmem:[%s1388 + $0x98] sm:$0xff]
    %v1409 = vld [vmem:[%s1388 + $0xa0] sm:$0xff]
    %v1410 = vld [vmem:[%s1388 + $0xa8] sm:$0xff]
    %v1411 = vld [vmem:[%s1388 + $0xb0] sm:$0xff]
    %v1412 = vld [vmem:[%s1388 + $0xb8] sm:$0xff]
    %v1413 = vld [vmem:[%s1388 + $0xc0] sm:$0xff]
    %v1414 = vld [vmem:[%s1388 + $0xc8] sm:$0xff]
    %v1415 = vld [vmem:[%s1388 + $0xd0] sm:$0xff]
    %v1416 = vld [vmem:[%s1388 + $0xd8] sm:$0xff]
    %v1417 = vld [vmem:[%s1388 + $0xe0] sm:$0xff]
    %v1418 = vld [vmem:[%s1388 + $0xe8] sm:$0xff]
    %v1419 = vld [vmem:[%s1388 + $0xf0] sm:$0xff]
    %v1420 = vld [vmem:[%s1388 + $0xf8] sm:$0xff]
    %s1421 = scalar_lea.vmem %s4, 6
    %v1422 = vld [vmem:[%s1421] sm:$0x3]
    %v1424 = vlaneseq
    %v1425 = vshrl.u32 %v1424, 7
    %v1426 = vsub.s32 0, %v1425
    %v1427 = vrot.slane %v1422, %v1426
    %v1428 = vlaneseq
    %v1429 = vshrl.u32 %v1428, 7
    %v1430 = vsub.s32 1, %v1429
    %v1431 = vrot.slane %v1422, %v1430
    %v1466 = vunpack.c.l.b16 %v1389
    %v1467 = vunpack.c.h.b16 %v1389
    %v1468 = vunpack.c.l.b16 %v1390
    %v1469 = vunpack.c.h.b16 %v1390
    %v1470 = vunpack.c.l.b16 %v1391
    %v1471 = vunpack.c.h.b16 %v1391
    %v1472 = vunpack.c.l.b16 %v1392
    %v1473 = vunpack.c.h.b16 %v1392
    %v1474 = vunpack.c.l.b16 %v1393
    %v1475 = vunpack.c.h.b16 %v1393
    %v1476 = vunpack.c.l.b16 %v1394
    %v1477 = vunpack.c.h.b16 %v1394
    %v1478 = vunpack.c.l.b16 %v1395
    %v1479 = vunpack.c.h.b16 %v1395
    %v1480 = vunpack.c.l.b16 %v1396
    %v1481 = vunpack.c.h.b16 %v1396
    %v1482 = vunpack.c.l.b16 %v1397
    %v1483 = vunpack.c.h.b16 %v1397
    %v1484 = vunpack.c.l.b16 %v1398
    %v1485 = vunpack.c.h.b16 %v1398
    %v1486 = vunpack.c.l.b16 %v1399
    %v1487 = vunpack.c.h.b16 %v1399
    %v1488 = vunpack.c.l.b16 %v1400
    %v1489 = vunpack.c.h.b16 %v1400
    %v1490 = vunpack.c.l.b16 %v1401
    %v1491 = vunpack.c.h.b16 %v1401
    %v1492 = vunpack.c.l.b16 %v1402
    %v1493 = vunpack.c.h.b16 %v1402
    %v1494 = vunpack.c.l.b16 %v1403
    %v1495 = vunpack.c.h.b16 %v1403
    %v1496 = vunpack.c.l.b16 %v1404
    %v1497 = vunpack.c.h.b16 %v1404
    %v1498 = vunpack.c.l.b16 %v1405
    %v1499 = vunpack.c.h.b16 %v1405
    %v1500 = vunpack.c.l.b16 %v1406
    %v1501 = vunpack.c.h.b16 %v1406
    %v1502 = vunpack.c.l.b16 %v1407
    %v1503 = vunpack.c.h.b16 %v1407
    %v1504 = vunpack.c.l.b16 %v1408
    %v1505 = vunpack.c.h.b16 %v1408
    %v1506 = vunpack.c.l.b16 %v1409
    %v1507 = vunpack.c.h.b16 %v1409
    %v1508 = vunpack.c.l.b16 %v1410
    %v1509 = vunpack.c.h.b16 %v1410
    %v1510 = vunpack.c.l.b16 %v1411
    %v1511 = vunpack.c.h.b16 %v1411
    %v1512 = vunpack.c.l.b16 %v1412
    %v1513 = vunpack.c.h.b16 %v1412
    %v1514 = vunpack.c.l.b16 %v1413
    %v1515 = vunpack.c.h.b16 %v1413
    %v1516 = vunpack.c.l.b16 %v1414
    %v1517 = vunpack.c.h.b16 %v1414
    %v1518 = vunpack.c.l.b16 %v1415
    %v1519 = vunpack.c.h.b16 %v1415
    %v1520 = vunpack.c.l.b16 %v1416
    %v1521 = vunpack.c.h.b16 %v1416
    %v1522 = vunpack.c.l.b16 %v1417
    %v1523 = vunpack.c.h.b16 %v1417
    %v1524 = vunpack.c.l.b16 %v1418
    %v1525 = vunpack.c.h.b16 %v1418
    %v1526 = vunpack.c.l.b16 %v1419
    %v1527 = vunpack.c.h.b16 %v1419
    %v1528 = vunpack.c.l.b16 %v1420
    %v1529 = vunpack.c.h.b16 %v1420
    %v1530 = vpack.c.b16 %v1468, %v1466
    %v1531 = vpack.c.b16 %v1469, %v1467
    %v1532 = vpack.c.b16 %v1472, %v1470
    %v1533 = vpack.c.b16 %v1473, %v1471
    %v1534 = vpack.c.b16 %v1476, %v1474
    %v1535 = vpack.c.b16 %v1477, %v1475
    %v1536 = vpack.c.b16 %v1480, %v1478
    %v1537 = vpack.c.b16 %v1481, %v1479
    %v1538 = vpack.c.b16 %v1484, %v1482
    %v1539 = vpack.c.b16 %v1485, %v1483
    %v1540 = vpack.c.b16 %v1488, %v1486
    %v1541 = vpack.c.b16 %v1489, %v1487
    %v1542 = vpack.c.b16 %v1492, %v1490
    %v1543 = vpack.c.b16 %v1493, %v1491
    %v1544 = vpack.c.b16 %v1496, %v1494
    %v1545 = vpack.c.b16 %v1497, %v1495
    %v1546 = vpack.c.b16 %v1500, %v1498
    %v1547 = vpack.c.b16 %v1501, %v1499
    %v1548 = vpack.c.b16 %v1504, %v1502
    %v1549 = vpack.c.b16 %v1505, %v1503
    %v1550 = vpack.c.b16 %v1508, %v1506
    %v1551 = vpack.c.b16 %v1509, %v1507
    %v1552 = vpack.c.b16 %v1512, %v1510
    %v1553 = vpack.c.b16 %v1513, %v1511
    %v1554 = vpack.c.b16 %v1516, %v1514
    %v1555 = vpack.c.b16 %v1517, %v1515
    %v1556 = vpack.c.b16 %v1520, %v1518
    %v1557 = vpack.c.b16 %v1521, %v1519
    %v1558 = vpack.c.b16 %v1524, %v1522
    %v1559 = vpack.c.b16 %v1525, %v1523
    %v1560 = vpack.c.b16 %v1528, %v1526
    %v1561 = vpack.c.b16 %v1529, %v1527
    %1594 = vmatprep.subr.bf16.mxu0 %v1531
    %1595 = vmatpush1.bf16.msra.mxu0 %v1530
    %1596 = vmatprep.subr.bf16.mxu0 %v1533
    %1597 = vmatpush1.bf16.msra.mxu0 %v1532
    %1598 = vmatprep.subr.bf16.mxu0 %v1535
    %1599 = vmatpush1.bf16.msra.mxu0 %v1534
    %1600 = vmatprep.subr.bf16.mxu0 %v1537
    %1601 = vmatpush1.bf16.msra.mxu0 %v1536
    %1602 = vmatprep.subr.bf16.mxu0 %v1539
    %1603 = vmatpush1.bf16.msra.mxu0 %v1538
    %1604 = vmatprep.subr.bf16.mxu0 %v1541
    %1605 = vmatpush1.bf16.msra.mxu0 %v1540
    %1606 = vmatprep.subr.bf16.mxu0 %v1543
    %1607 = vmatpush1.bf16.msra.mxu0 %v1542
    %1608 = vmatprep.subr.bf16.mxu0 %v1545
    %1609 = vmatpush1.bf16.msra.mxu0 %v1544
    %1610 = vmatprep.subr.bf16.mxu0 %v1547
    %1611 = vmatpush1.bf16.msra.mxu0 %v1546
    %1612 = vmatprep.subr.bf16.mxu0 %v1549
    %1613 = vmatpush1.bf16.msra.mxu0 %v1548
    %1614 = vmatprep.subr.bf16.mxu0 %v1551
    %1615 = vmatpush1.bf16.msra.mxu0 %v1550
    %1616 = vmatprep.subr.bf16.mxu0 %v1553
    %1617 = vmatpush1.bf16.msra.mxu0 %v1552
    %1618 = vmatprep.subr.bf16.mxu0 %v1555
    %1619 = vmatpush1.bf16.msra.mxu0 %v1554
    %1620 = vmatprep.subr.bf16.mxu0 %v1557
    %1621 = vmatpush1.bf16.msra.mxu0 %v1556
    %1622 = vmatprep.subr.bf16.mxu0 %v1559
    %1623 = vmatpush1.bf16.msra.mxu0 %v1558
    %1624 = vmatprep.subr.bf16.mxu0 %v1561
    %1625 = vmatpush1.bf16.msra.mxu0 %v1560
    %1626 = vmatprep.mubr.bf16.mxu0 %v1381
    %1627 = vmatmul.mubr.bf16.gmra.mrb[0].mxu0 %v1380
    %v1628 = vpop.f32.mrb[0].mxu0
    %v1629 = vadd.f32 %v1427, %v1628
    %v1630 = vpop.f32.mrb[0].mxu0
    %v1631 = vadd.f32 %v1431, %v1630
    %v1632 = vpop.f32.mrb[0].mxu0
    %v1633 = vadd.f32 %v1427, %v1632
    %v1634 = vpop.f32.mrb[0].mxu0
    %v1635 = vadd.f32 %v1431, %v1634
    %1636 = vmatprep.mubr.bf16.mxu0 %v1383
    %1637 = vmatmul.mubr.bf16.gmra.mrb[0].mxu0 %v1382
    %v1638 = vpop.f32.mrb[0].mxu0
    %v1639 = vadd.f32 %v1427, %v1638
    %v1640 = vpop.f32.mrb[0].mxu0
    %v1641 = vadd.f32 %v1431, %v1640
    %v1642 = vpop.f32.mrb[0].mxu0
    %v1643 = vadd.f32 %v1427, %v1642
    %v1644 = vpop.f32.mrb[0].mxu0
    %v1645 = vadd.f32 %v1431, %v1644
    %1646 = vmatprep.mubr.bf16.mxu0 %v1385
    %1647 = vmatmul.mubr.bf16.gmra.mrb[0].mxu0 %v1384
    %v1648 = vpop.f32.mrb[0].mxu0
    %v1649 = vadd.f32 %v1427, %v1648
    %v1650 = vpop.f32.mrb[0].mxu0
    %v1651 = vadd.f32 %v1431, %v1650
    %v1652 = vpop.f32.mrb[0].mxu0
    %v1653 = vadd.f32 %v1427, %v1652
    %v1654 = vpop.f32.mrb[0].mxu0
    %v1655 = vadd.f32 %v1431, %v1654
    %1656 = vmatprep.mubr.bf16.mxu0 %v1387
    %1657 = vmatmul.mubr.bf16.gmra.mrb[0].mxu0 %v1386
    %v1658 = vpop.f32.mrb[0].mxu0
    %v1659 = vadd.f32 %v1427, %v1658
    %v1660 = vpop.f32.mrb[0].mxu0
    %v1661 = vadd.f32 %v1431, %v1660
    %v1662 = vpop.f32.mrb[0].mxu0
    %v1663 = vadd.f32 %v1427, %v1662
    %v1664 = vpop.f32.mrb[0].mxu0
    %v1665 = vadd.f32 %v1431, %v1664
    %1666 = vdwg.mxu0
    %v1667 = vmul.f32 %v1629, 0.5
    %v1668 = vmul.f32 %v1631, 0.5
    %v1669 = vmul.f32 %v1633, 0.5
    %v1670 = vmul.f32 %v1635, 0.5
    %v1671 = vmul.f32 %v1639, 0.5
    %v1672 = vmul.f32 %v1641, 0.5
    %v1673 = vmul.f32 %v1643, 0.5
    %v1674 = vmul.f32 %v1645, 0.5
    %v1675 = vmul.f32 %v1649, 0.5
    %v1676 = vmul.f32 %v1651, 0.5
    %v1677 = vmul.f32 %v1653, 0.5
    %v1678 = vmul.f32 %v1655, 0.5
    %v1679 = vmul.f32 %v1659, 0.5
    %v1680 = vmul.f32 %v1661, 0.5
    %v1681 = vmul.f32 %v1663, 0.5
    %v1682 = vmul.f32 %v1665, 0.5
    %v1683 = vtanh.pop %v1667
    %v1684 = vtanh.pop %v1668
    %v1685 = vtanh.pop %v1669
    %v1686 = vtanh.pop %v1670
    %v1687 = vtanh.pop %v1671
    %v1688 = vtanh.pop %v1672
    %v1689 = vtanh.pop %v1673
    %v1690 = vtanh.pop %v1674
    %v1691 = vtanh.pop %v1675
    %v1692 = vtanh.pop %v1676
    %v1693 = vtanh.pop %v1677
    %v1694 = vtanh.pop %v1678
    %v1695 = vtanh.pop %v1679
    %v1696 = vtanh.pop %v1680
    %v1697 = vtanh.pop %v1681
    %v1698 = vtanh.pop %v1682
    %v1699 = vmul.f32 %v1683, 0.5
    %v1700 = vmul.f32 %v1684, 0.5
    %v1701 = vmul.f32 %v1685, 0.5
    %v1702 = vmul.f32 %v1686, 0.5
    %v1703 = vmul.f32 %v1687, 0.5
    %v1704 = vmul.f32 %v1688, 0.5
    %v1705 = vmul.f32 %v1689, 0.5
    %v1706 = vmul.f32 %v1690, 0.5
    %v1707 = vmul.f32 %v1691, 0.5
    %v1708 = vmul.f32 %v1692, 0.5
    %v1709 = vmul.f32 %v1693, 0.5
    %v1710 = vmul.f32 %v1694, 0.5
    %v1711 = vmul.f32 %v1695, 0.5
    %v1712 = vmul.f32 %v1696, 0.5
    %v1713 = vmul.f32 %v1697, 0.5
    %v1714 = vmul.f32 %v1698, 0.5
    %v1715 = vadd.f32 %v1699, 0.5
    %v1716 = vadd.f32 %v1700, 0.5
    %v1717 = vadd.f32 %v1701, 0.5
    %v1718 = vadd.f32 %v1702, 0.5
    %v1719 = vadd.f32 %v1703, 0.5
    %v1720 = vadd.f32 %v1704, 0.5
    %v1721 = vadd.f32 %v1705, 0.5
    %v1722 = vadd.f32 %v1706, 0.5
    %v1723 = vadd.f32 %v1707, 0.5
    %v1724 = vadd.f32 %v1708, 0.5
    %v1725 = vadd.f32 %v1709, 0.5
    %v1726 = vadd.f32 %v1710, 0.5
    %v1727 = vadd.f32 %v1711, 0.5
    %v1728 = vadd.f32 %v1712, 0.5
    %v1729 = vadd.f32 %v1713, 0.5
    %v1730 = vadd.f32 %v1714, 0.5
    %v1731 = vmul.f32 %v1629, %v1715
    %v1732 = vmul.f32 %v1631, %v1716
    %v1733 = vmul.f32 %v1633, %v1717
    %v1734 = vmul.f32 %v1635, %v1718
    %v1735 = vmul.f32 %v1639, %v1719
    %v1736 = vmul.f32 %v1641, %v1720
    %v1737 = vmul.f32 %v1643, %v1721
    %v1738 = vmul.f32 %v1645, %v1722
    %v1739 = vmul.f32 %v1649, %v1723
    %v1740 = vmul.f32 %v1651, %v1724
    %v1741 = vmul.f32 %v1653, %v1725
    %v1742 = vmul.f32 %v1655, %v1726
    %v1743 = vmul.f32 %v1659, %v1727
    %v1744 = vmul.f32 %v1661, %v1728
    %v1745 = vmul.f32 %v1663, %v1729
    %v1746 = vmul.f32 %v1665, %v1730
    %v1747 = vpack.c.bf16 %v1733, %v1731
    %v1748 = vpack.c.bf16 %v1734, %v1732
    %v1749 = vpack.c.bf16 %v1737, %v1735
    %v1750 = vpack.c.bf16 %v1738, %v1736
    %v1751 = vpack.c.bf16 %v1741, %v1739
    %v1752 = vpack.c.bf16 %v1742, %v1740
    %v1753 = vpack.c.bf16 %v1745, %v1743
    %v1754 = vpack.c.bf16 %v1746, %v1744
    %v1755 = vld [vmem:[#allocation4] sm:$0xf]
    %v1756 = vld [vmem:[#allocation4 + $0x4] sm:$0xf]
    %v1757 = vld [vmem:[#allocation4 + $0x8] sm:$0xf]
    %v1758 = vld [vmem:[#allocation4 + $0xc] sm:$0xf]
    %v1759 = vld [vmem:[#allocation4 + $0x10] sm:$0xf]
    %v1760 = vld [vmem:[#allocation4 + $0x14] sm:$0xf]
    %v1761 = vld [vmem:[#allocation4 + $0x18] sm:$0xf]
    %v1762 = vld [vmem:[#allocation4 + $0x1c] sm:$0xf]
    %v1763 = vld [vmem:[#allocation4 + $0x20] sm:$0xf]
    %v1764 = vld [vmem:[#allocation4 + $0x24] sm:$0xf]
    %v1765 = vld [vmem:[#allocation4 + $0x28] sm:$0xf]
    %v1766 = vld [vmem:[#allocation4 + $0x2c] sm:$0xf]
    %v1767 = vld [vmem:[#allocation4 + $0x30] sm:$0xf]
    %v1768 = vld [vmem:[#allocation4 + $0x34] sm:$0xf]
    %v1769 = vld [vmem:[#allocation4 + $0x38] sm:$0xf]
    %v1770 = vld [vmem:[#allocation4 + $0x3c] sm:$0xf]
    %v1771 = vld [vmem:[#allocation4 + $0x40] sm:$0xf]
    %v1772 = vld [vmem:[#allocation4 + $0x44] sm:$0xf]
    %v1773 = vld [vmem:[#allocation4 + $0x48] sm:$0xf]
    %v1774 = vld [vmem:[#allocation4 + $0x4c] sm:$0xf]
    %v1775 = vld [vmem:[#allocation4 + $0x50] sm:$0xf]
    %v1776 = vld [vmem:[#allocation4 + $0x54] sm:$0xf]
    %v1777 = vld [vmem:[#allocation4 + $0x58] sm:$0xf]
    %v1778 = vld [vmem:[#allocation4 + $0x5c] sm:$0xf]
    %v1779 = vld [vmem:[#allocation4 + $0x60] sm:$0xf]
    %v1780 = vld [vmem:[#allocation4 + $0x64] sm:$0xf]
    %v1781 = vld [vmem:[#allocation4 + $0x68] sm:$0xf]
    %v1782 = vld [vmem:[#allocation4 + $0x6c] sm:$0xf]
    %v1783 = vld [vmem:[#allocation4 + $0x70] sm:$0xf]
    %v1784 = vld [vmem:[#allocation4 + $0x74] sm:$0xf]
    %v1785 = vld [vmem:[#allocation4 + $0x78] sm:$0xf]
    %v1786 = vld [vmem:[#allocation4 + $0x7c] sm:$0xf]
    %v1787 = vld [vmem:[%s6] sm:$0x1]
    %v1789 = vlaneseq
    %v1790 = vshrl.u32 %v1789, 7
    %v1791 = vsub.s32 0, %v1790
    %v1792 = vrot.slane %v1787, %v1791
    %v1826 = vunpack.c.l.b16 %v1755
    %v1827 = vunpack.c.l.b16 %v1756
    %v1828 = vunpack.c.l.b16 %v1757
    %v1829 = vunpack.c.l.b16 %v1758
    %v1830 = vunpack.c.l.b16 %v1759
    %v1831 = vunpack.c.l.b16 %v1760
    %v1832 = vunpack.c.l.b16 %v1761
    %v1833 = vunpack.c.l.b16 %v1762
    %v1834 = vunpack.c.l.b16 %v1763
    %v1835 = vunpack.c.l.b16 %v1764
    %v1836 = vunpack.c.l.b16 %v1765
    %v1837 = vunpack.c.l.b16 %v1766
    %v1838 = vunpack.c.l.b16 %v1767
    %v1839 = vunpack.c.l.b16 %v1768
    %v1840 = vunpack.c.l.b16 %v1769
    %v1841 = vunpack.c.l.b16 %v1770
    %v1842 = vunpack.c.l.b16 %v1771
    %v1843 = vunpack.c.l.b16 %v1772
    %v1844 = vunpack.c.l.b16 %v1773
    %v1845 = vunpack.c.l.b16 %v1774
    %v1846 = vunpack.c.l.b16 %v1775
    %v1847 = vunpack.c.l.b16 %v1776
    %v1848 = vunpack.c.l.b16 %v1777
    %v1849 = vunpack.c.l.b16 %v1778
    %v1850 = vunpack.c.l.b16 %v1779
    %v1851 = vunpack.c.l.b16 %v1780
    %v1852 = vunpack.c.l.b16 %v1781
    %v1853 = vunpack.c.l.b16 %v1782
    %v1854 = vunpack.c.l.b16 %v1783
    %v1855 = vunpack.c.l.b16 %v1784
    %v1856 = vunpack.c.l.b16 %v1785
    %v1857 = vunpack.c.l.b16 %v1786
    %v1858 = vpack.c.b16 %v1827, %v1826
    %v1859 = vpack.c.b16 %v1829, %v1828
    %v1860 = vpack.c.b16 %v1831, %v1830
    %v1861 = vpack.c.b16 %v1833, %v1832
    %v1862 = vpack.c.b16 %v1835, %v1834
    %v1863 = vpack.c.b16 %v1837, %v1836
    %v1864 = vpack.c.b16 %v1839, %v1838
    %v1865 = vpack.c.b16 %v1841, %v1840
    %v1866 = vpack.c.b16 %v1843, %v1842
    %v1867 = vpack.c.b16 %v1845, %v1844
    %v1868 = vpack.c.b16 %v1847, %v1846
    %v1869 = vpack.c.b16 %v1849, %v1848
    %v1870 = vpack.c.b16 %v1851, %v1850
    %v1871 = vpack.c.b16 %v1853, %v1852
    %v1872 = vpack.c.b16 %v1855, %v1854
    %v1873 = vpack.c.b16 %v1857, %v1856
    %1890 = vmatprep.subr.bf16.mxu0 0
    %1891 = vmatpush1.bf16.msra.mxu0 %v1858
    %1892 = vmatprep.subr.bf16.mxu0 0
    %1893 = vmatpush1.bf16.msra.mxu0 %v1859
    %1894 = vmatprep.subr.bf16.mxu0 0
    %1895 = vmatpush1.bf16.msra.mxu0 %v1860
    %1896 = vmatprep.subr.bf16.mxu0 0
    %1897 = vmatpush1.bf16.msra.mxu0 %v1861
    %1898 = vmatprep.subr.bf16.mxu0 0
    %1899 = vmatpush1.bf16.msra.mxu0 %v1862
    %1900 = vmatprep.subr.bf16.mxu0 0
    %1901 = vmatpush1.bf16.msra.mxu0 %v1863
    %1902 = vmatprep.subr.bf16.mxu0 0
    %1903 = vmatpush1.bf16.msra.mxu0 %v1864
    %1904 = vmatprep.subr.bf16.mxu0 0
    %1905 = vmatpush1.bf16.msra.mxu0 %v1865
    %1906 = vmatprep.subr.bf16.mxu0 0
    %1907 = vmatpush1.bf16.msra.mxu0 %v1866
    %1908 = vmatprep.subr.bf16.mxu0 0
    %1909 = vmatpush1.bf16.msra.mxu0 %v1867
    %1910 = vmatprep.subr.bf16.mxu0 0
    %1911 = vmatpush1.bf16.msra.mxu0 %v1868
    %1912 = vmatprep.subr.bf16.mxu0 0
    %1913 = vmatpush1.bf16.msra.mxu0 %v1869
    %1914 = vmatprep.subr.bf16.mxu0 0
    %1915 = vmatpush1.bf16.msra.mxu0 %v1870
    %1916 = vmatprep.subr.bf16.mxu0 0
    %1917 = vmatpush1.bf16.msra.mxu0 %v1871
    %1918 = vmatprep.subr.bf16.mxu0 0
    %1919 = vmatpush1.bf16.msra.mxu0 %v1872
    %1920 = vmatprep.subr.bf16.mxu0 0
    %1921 = vmatpush1.bf16.msra.mxu0 %v1873
    %1922 = vmatprep.mubr.bf16.mxu0 %v1748
    %1923 = vmatmul.mubr.bf16.gmra.mrb[0].mxu0 %v1747
    %v1924 = vpop.f32.mrb[0].mxu0
    %v1925 = vadd.f32 %v1792, %v1924
    %v1926 = vpop.f32.mrb[0].mxu0
    %v1927 = vpop.f32.mrb[0].mxu0
    %v1928 = vadd.f32 %v1792, %v1927
    %v1929 = vpop.f32.mrb[0].mxu0
    %1930 = vmatprep.mubr.bf16.mxu0 %v1750
    %1931 = vmatmul.mubr.bf16.gmra.mrb[0].mxu0 %v1749
    %v1932 = vpop.f32.mrb[0].mxu0
    %v1933 = vadd.f32 %v1792, %v1932
    %v1934 = vpop.f32.mrb[0].mxu0
    %v1935 = vpop.f32.mrb[0].mxu0
    %v1936 = vadd.f32 %v1792, %v1935
    %v1937 = vpop.f32.mrb[0].mxu0
    %1938 = vmatprep.mubr.bf16.mxu0 %v1752
    %1939 = vmatmul.mubr.bf16.gmra.mrb[0].mxu0 %v1751
    %v1940 = vpop.f32.mrb[0].mxu0
    %v1941 = vadd.f32 %v1792, %v1940
    %v1942 = vpop.f32.mrb[0].mxu0
    %v1943 = vpop.f32.mrb[0].mxu0
    %v1944 = vadd.f32 %v1792, %v1943
    %v1945 = vpop.f32.mrb[0].mxu0
    %1946 = vmatprep.mubr.bf16.mxu0 %v1754
    %1947 = vmatmul.mubr.bf16.gmra.mrb[0].mxu0 %v1753
    %v1948 = vpop.f32.mrb[0].mxu0
    %v1949 = vadd.f32 %v1792, %v1948
    %v1950 = vpop.f32.mrb[0].mxu0
    %v1951 = vpop.f32.mrb[0].mxu0
    %v1952 = vadd.f32 %v1792, %v1951
    %v1953 = vpop.f32.mrb[0].mxu0
    %1954 = vdwg.mxu0
    %vm1955 = vcmask 31744
    %1956 = vst.msk [vmem:[%s7] sm:$0xff] %vm1955, %v1925
    %1957 = vst.msk [vmem:[%s7 + $0x8] sm:$0xff] %vm1955, %v1928
    %1958 = vst.msk [vmem:[%s7 + $0x10] sm:$0xff] %vm1955, %v1933
    %1959 = vst.msk [vmem:[%s7 + $0x18] sm:$0xff] %vm1955, %v1936
    %1960 = vst.msk [vmem:[%s7 + $0x20] sm:$0xff] %vm1955, %v1941
    %1961 = vst.msk [vmem:[%s7 + $0x28] sm:$0xff] %vm1955, %v1944
    %1962 = vst.msk [vmem:[%s7 + $0x30] sm:$0xff] %vm1955, %v1949
    %1963 = vst.msk [vmem:[%s7 + $0x38] sm:$0xff] %vm1955, %v1952
    // Predicated region
    $region38: #{mlp_forward.1} parent=1 // pred_check
      _
    $region39: #{mlp_forward.1} parent=1 // pred_check_branch
      %1965 = sbr.rel (0) target = $region41
    $region40: #{mlp_forward.1} parent=1 // pred_region
      _
    $region41: #{mlp_forward.1} parent=1 // pred_fallthru
      _
    // Predicated region
    $region42: #{mlp_forward.1} parent=1 // pred_check
      _
    $region43: #{mlp_forward.1} parent=1 // pred_check_branch
      %1967 = sbr.rel (0) target = $region45
    $region44: #{mlp_forward.1} parent=1 // pred_region
      _
    $region45: #{mlp_forward.1} parent=1 // pred_fallthru
      _
    %1968 = vsyncpa [#allocation3], 1
    %1969 = vsyncpa [#allocation5], 1

</llo_original>
